<compile_context>
chip_gen: v5e
topology: v5e:2x2
jax: 0.10.0
libtpu: 0.0.40
codegen_flags: <defaults>
</compile_context>

<pallas_src>
import jax
import jax.numpy as jnp
from jax.experimental import pallas as pl
from jax.experimental.pallas import tpu as pltpu

HIDDEN1 = 410
HIDDEN2 = 410
HIDDEN3 = 200


def _round_up(x, m):
    return ((x + m - 1) // m) * m


def _pad_to(arr, shape):
    pads = [(0, t - s) for s, t in zip(arr.shape, shape)]
    return jnp.pad(arr, pads)


def mlp_kernel(x_ref, w1_ref, b1_ref, w2_ref, b2_ref, w3_ref, b3_ref,
               w4_ref, b4_ref, o_ref):
    # layer_in + ReLU  (bf16 matmul operands, f32 accumulate / elementwise)
    h = jnp.dot(x_ref[...], w1_ref[...], preferred_element_type=jnp.float32)
    h = jnp.maximum(h + b1_ref[...], 0.0)
    # layer_hidden1 + (dropout: identity in eval) + ReLU
    h = jnp.dot(h.astype(jnp.bfloat16), w2_ref[...],
                preferred_element_type=jnp.float32)
    h = jnp.maximum(h + b2_ref[...], 0.0)
    # layer_hidden2 + (dropout: identity in eval) + ReLU
    h = jnp.dot(h.astype(jnp.bfloat16), w3_ref[...],
                preferred_element_type=jnp.float32)
    h = jnp.maximum(h + b3_ref[...], 0.0)
    # layer_output (no activation); lane-dense (128-wide padded) store
    out = jnp.dot(h.astype(jnp.bfloat16), w4_ref[...],
                  preferred_element_type=jnp.float32)
    o_ref[...] = (out + b4_ref[...]).astype(o_ref.dtype)
    # TODO(synk): training-mode dropout (stochastic masking with p_drop) omitted;
    # would use pltpu.prng_seed + pltpu.prng_random_bits if needed.


def red_arquitectura_b_forward(x, params, *, max_tile_b=256):
    """x: [B, input_size] float32; params: dict of [in, out] weights and [1, out] biases."""
    B, input_size = x.shape
    output_size = params["w4"].shape[1]

    # Lane-aligned (multiple-of-128) padded feature dims.
    in_p = _round_up(input_size, 128)
    h1_p = _round_up(HIDDEN1, 128)            # 512
    h2_p = _round_up(HIDDEN2, 128)            # 512
    h3_p = _round_up(HIDDEN3, 128)            # 256
    out_p = _round_up(output_size, 128)

    # Batch tile: as large as practical to feed the MXU rows; multiple of 16 for bf16 sublanes.
    tile_b = min(max_tile_b, _round_up(B, 16))
    tile_b = _round_up(tile_b, 16)
    B_p = _round_up(B, tile_b)                # pad ragged batches, slice after

    # Zero-pad once in the wrapper; matmul operands in bf16, biases stay f32.
    # (Biases are zero-padded too, so padded lanes stay exactly zero through ReLU.)
    xp = _pad_to(x, (B_p, in_p)).astype(jnp.bfloat16)
    w1 = _pad_to(params["w1"], (in_p, h1_p)).astype(jnp.bfloat16)
    w2 = _pad_to(params["w2"], (h1_p, h2_p)).astype(jnp.bfloat16)
    w3 = _pad_to(params["w3"], (h2_p, h3_p)).astype(jnp.bfloat16)
    w4 = _pad_to(params["w4"], (h3_p, out_p)).astype(jnp.bfloat16)
    b1 = _pad_to(params["b1"], (1, h1_p))
    b2 = _pad_to(params["b2"], (1, h2_p))
    b3 = _pad_to(params["b3"], (1, h3_p))
    b4 = _pad_to(params["b4"], (1, out_p))

    grid = (B_p // tile_b,)
    # Weights/biases are small (~1 MiB bf16 total) and fully resident each grid step.
    full = lambda shape: pl.BlockSpec(shape, lambda i: (0, 0))

    out_padded = pl.pallas_call(
        mlp_kernel,
        out_shape=jax.ShapeDtypeStruct((B_p, out_p), jnp.float32),
        grid_spec=pltpu.PrefetchScalarGridSpec(
            num_scalar_prefetch=0,
            grid=grid,
            in_specs=[
                pl.BlockSpec((tile_b, in_p), lambda i: (i, 0)),   # x tile
                full((in_p, h1_p)), full((1, h1_p)),              # layer_in
                full((h1_p, h2_p)), full((1, h2_p)),              # layer_hidden1
                full((h2_p, h3_p)), full((1, h3_p)),              # layer_hidden2
                full((h3_p, out_p)), full((1, out_p)),            # layer_output
            ],
            out_specs=pl.BlockSpec((tile_b, out_p), lambda i: (i, 0)),
        ),
        compiler_params=pltpu.CompilerParams(
            dimension_semantics=("parallel",)),
    )(xp, w1, b1, w2, b2, w3, b3, w4, b4)

    return out_padded[:B, :output_size]


def init_params(key, input_size, output_size):
    """Deterministic synthetic params; weights stored as [in, out] (pre-transposed)."""
    ks = jax.random.split(key, 8)

    def lin(kw, kb, fan_in, fan_out):
        bound = 1.0 / jnp.sqrt(fan_in)
        w = jax.random.uniform(kw, (fan_in, fan_out), jnp.float32, -bound, bound)
        b = jax.random.uniform(kb, (1, fan_out), jnp.float32, -bound, bound)
        return w, b

    w1, b1 = lin(ks[0], ks[1], input_size, HIDDEN1)
    w2, b2 = lin(ks[2], ks[3], HIDDEN1, HIDDEN2)
    w3, b3 = lin(ks[4], ks[5], HIDDEN2, HIDDEN3)
    w4, b4 = lin(ks[6], ks[7], HIDDEN3, output_size)
    return dict(w1=w1, b1=b1, w2=w2, b2=b2, w3=w3, b3=b3, w4=w4, b4=b4)


def reference_forward(x, p):
    """Pure-JAX reference using the same bf16-operand / f32-accumulate math as the kernel."""
    bf = jnp.bfloat16

    def lin(h, w, b):
        return jnp.dot(h.astype(bf), w.astype(bf),
                       preferred_element_type=jnp.float32) + b

    h = jnp.maximum(lin(x, p["w1"], p["b1"]), 0.0)
    h = jnp.maximum(lin(h, p["w2"], p["b2"]), 0.0)
    h = jnp.maximum(lin(h, p["w3"], p["b3"]), 0.0)
    return lin(h, p["w4"], p["b4"])


if __name__ == "__main__":
    key = jax.random.PRNGKey(0)
    k_x, k_p = jax.random.split(key)

    batch = 16
    input_size = 32
    output_size = 10

    x = jax.random.normal(k_x, (batch, input_size), dtype=jnp.float32)
    params = init_params(k_p, input_size, output_size)

    out = red_arquitectura_b_forward(x, params)
    out = jax.block_until_ready(out)

    ref = reference_forward(x, params)
    assert out.shape == (batch, output_size)
    assert jnp.allclose(out, ref, atol=2e-2, rtol=2e-2), (
        float(jnp.max(jnp.abs(out - ref))))

    print("KERNEL_OK")
</pallas_src>

<mosaic_0001>
module attributes {stable_mosaic.version = 11 : i64} {
  func.func @mlp_kernel(%arg0: i32, %arg1: memref<16x128xbf16, #tpu.memory_space<vmem>>, %arg2: memref<128x512xbf16, #tpu.memory_space<vmem>>, %arg3: memref<1x512xf32, #tpu.memory_space<vmem>>, %arg4: memref<512x512xbf16, #tpu.memory_space<vmem>>, %arg5: memref<1x512xf32, #tpu.memory_space<vmem>>, %arg6: memref<512x256xbf16, #tpu.memory_space<vmem>>, %arg7: memref<1x256xf32, #tpu.memory_space<vmem>>, %arg8: memref<256x128xbf16, #tpu.memory_space<vmem>>, %arg9: memref<1x128xf32, #tpu.memory_space<vmem>>, %arg10: memref<16x128xf32, #tpu.memory_space<vmem>>) attributes {dimension_semantics = [#tpu.dimension_semantics<parallel>], iteration_bounds = array<i64: 1>, scalar_prefetch = 0 : i64, scratch_operands = 0 : i64, tpu.core_type = #tpu.core_type<tc>, window_params = [{transform_indices = @transform_0, window_bounds = array<i64: 16, 128>}, {pipeline_mode = #tpu.pipeline_mode<synchronous>, transform_indices = @transform_1, window_bounds = array<i64: 128, 512>}, {pipeline_mode = #tpu.pipeline_mode<synchronous>, transform_indices = @transform_2, window_bounds = array<i64: 1, 512>}, {pipeline_mode = #tpu.pipeline_mode<synchronous>, transform_indices = @transform_3, window_bounds = array<i64: 512, 512>}, {pipeline_mode = #tpu.pipeline_mode<synchronous>, transform_indices = @transform_4, window_bounds = array<i64: 1, 512>}, {pipeline_mode = #tpu.pipeline_mode<synchronous>, transform_indices = @transform_5, window_bounds = array<i64: 512, 256>}, {pipeline_mode = #tpu.pipeline_mode<synchronous>, transform_indices = @transform_6, window_bounds = array<i64: 1, 256>}, {pipeline_mode = #tpu.pipeline_mode<synchronous>, transform_indices = @transform_7, window_bounds = array<i64: 256, 128>}, {pipeline_mode = #tpu.pipeline_mode<synchronous>, transform_indices = @transform_8, window_bounds = array<i64: 1, 128>}, {transform_indices = @transform_9, window_bounds = array<i64: 16, 128>}]} {
    %c0 = arith.constant 0 : index
    %c0_0 = arith.constant 0 : index
    %0 = vector.load %arg1[%c0, %c0_0] : memref<16x128xbf16, #tpu.memory_space<vmem>>, vector<16x128xbf16>
    %c0_1 = arith.constant 0 : index
    %c0_2 = arith.constant 0 : index
    %1 = vector.load %arg2[%c0_1, %c0_2] : memref<128x512xbf16, #tpu.memory_space<vmem>>, vector<128x512xbf16>
    %cst = arith.constant dense<0.000000e+00> : vector<16x512xf32>
    %2 = tpu.matmul %0, %1, %cst {dimension_numbers = #tpu.dot_dimension_numbers<[1], [0], [0], [1], [0, 0, 1, 1], [], []>} : vector<16x128xbf16>, vector<128x512xbf16>, vector<16x512xf32> -> vector<16x512xf32>
    %c0_3 = arith.constant 0 : index
    %c0_4 = arith.constant 0 : index
    %3 = vector.load %arg3[%c0_3, %c0_4] : memref<1x512xf32, #tpu.memory_space<vmem>>, vector<1x512xf32>
    %4 = vector.broadcast %3 : vector<1x512xf32> to vector<16x512xf32>
    %5 = arith.addf %2, %4 : vector<16x512xf32>
    %cst_5 = arith.constant 0.000000e+00 : f32
    %6 = vector.broadcast %cst_5 : f32 to vector<16x512xf32>
    %7 = arith.maximumf %5, %6 : vector<16x512xf32>
    %8 = arith.truncf %7 : vector<16x512xf32> to vector<16x512xbf16>
    %c0_6 = arith.constant 0 : index
    %c0_7 = arith.constant 0 : index
    %9 = vector.load %arg4[%c0_6, %c0_7] : memref<512x512xbf16, #tpu.memory_space<vmem>>, vector<512x512xbf16>
    %cst_8 = arith.constant dense<0.000000e+00> : vector<16x512xf32>
    %10 = tpu.matmul %8, %9, %cst_8 {dimension_numbers = #tpu.dot_dimension_numbers<[1], [0], [0], [1], [0, 0, 1, 1], [], []>} : vector<16x512xbf16>, vector<512x512xbf16>, vector<16x512xf32> -> vector<16x512xf32>
    %c0_9 = arith.constant 0 : index
    %c0_10 = arith.constant 0 : index
    %11 = vector.load %arg5[%c0_9, %c0_10] : memref<1x512xf32, #tpu.memory_space<vmem>>, vector<1x512xf32>
    %12 = vector.broadcast %11 : vector<1x512xf32> to vector<16x512xf32>
    %13 = arith.addf %10, %12 : vector<16x512xf32>
    %cst_11 = arith.constant 0.000000e+00 : f32
    %14 = vector.broadcast %cst_11 : f32 to vector<16x512xf32>
    %15 = arith.maximumf %13, %14 : vector<16x512xf32>
    %16 = arith.truncf %15 : vector<16x512xf32> to vector<16x512xbf16>
    %c0_12 = arith.constant 0 : index
    %c0_13 = arith.constant 0 : index
    %17 = vector.load %arg6[%c0_12, %c0_13] : memref<512x256xbf16, #tpu.memory_space<vmem>>, vector<512x256xbf16>
    %cst_14 = arith.constant dense<0.000000e+00> : vector<16x256xf32>
    %18 = tpu.matmul %16, %17, %cst_14 {dimension_numbers = #tpu.dot_dimension_numbers<[1], [0], [0], [1], [0, 0, 1, 1], [], []>} : vector<16x512xbf16>, vector<512x256xbf16>, vector<16x256xf32> -> vector<16x256xf32>
    %c0_15 = arith.constant 0 : index
    %c0_16 = arith.constant 0 : index
    %19 = vector.load %arg7[%c0_15, %c0_16] : memref<1x256xf32, #tpu.memory_space<vmem>>, vector<1x256xf32>
    %20 = vector.broadcast %19 : vector<1x256xf32> to vector<16x256xf32>
    %21 = arith.addf %18, %20 : vector<16x256xf32>
    %cst_17 = arith.constant 0.000000e+00 : f32
    %22 = vector.broadcast %cst_17 : f32 to vector<16x256xf32>
    %23 = arith.maximumf %21, %22 : vector<16x256xf32>
    %24 = arith.truncf %23 : vector<16x256xf32> to vector<16x256xbf16>
    %c0_18 = arith.constant 0 : index
    %c0_19 = arith.constant 0 : index
    %25 = vector.load %arg8[%c0_18, %c0_19] : memref<256x128xbf16, #tpu.memory_space<vmem>>, vector<256x128xbf16>
    %cst_20 = arith.constant dense<0.000000e+00> : vector<16x128xf32>
    %26 = tpu.matmul %24, %25, %cst_20 {dimension_numbers = #tpu.dot_dimension_numbers<[1], [0], [0], [1], [0, 0, 1, 1], [], []>} : vector<16x256xbf16>, vector<256x128xbf16>, vector<16x128xf32> -> vector<16x128xf32>
    %c0_21 = arith.constant 0 : index
    %c0_22 = arith.constant 0 : index
    %27 = vector.load %arg9[%c0_21, %c0_22] : memref<1x128xf32, #tpu.memory_space<vmem>>, vector<1x128xf32>
    %28 = vector.broadcast %27 : vector<1x128xf32> to vector<16x128xf32>
    %29 = arith.addf %26, %28 : vector<16x128xf32>
    %c0_23 = arith.constant 0 : index
    %c0_24 = arith.constant 0 : index
    %30 = vector.load %arg10[%c0_23, %c0_24] : memref<16x128xf32, #tpu.memory_space<vmem>>, vector<16x128xf32>
    tpu.vector_store %arg10[%c0_23, %c0_24], %29 {strides = array<i32>} : memref<16x128xf32, #tpu.memory_space<vmem>>, vector<16x128xf32>,
    return
  }
  func.func @transform_0(%arg0: i32) -> (i32, i32) {
    %c0_i32 = arith.constant 0 : i32
    %c0_i32_0 = arith.constant 0 : i32
    return %arg0, %c0_i32 : i32, i32
  }
  func.func @transform_1(%arg0: i32) -> (i32, i32) {
    %c0_i32 = arith.constant 0 : i32
    %c0_i32_0 = arith.constant 0 : i32
    %c0_i32_1 = arith.constant 0 : i32
    return %c0_i32, %c0_i32_0 : i32, i32
  }
  func.func @transform_2(%arg0: i32) -> (i32, i32) {
    %c0_i32 = arith.constant 0 : i32
    %c0_i32_0 = arith.constant 0 : i32
    %c0_i32_1 = arith.constant 0 : i32
    return %c0_i32, %c0_i32_0 : i32, i32
  }
  func.func @transform_3(%arg0: i32) -> (i32, i32) {
    %c0_i32 = arith.constant 0 : i32
    %c0_i32_0 = arith.constant 0 : i32
    %c0_i32_1 = arith.constant 0 : i32
    return %c0_i32, %c0_i32_0 : i32, i32
  }
  func.func @transform_4(%arg0: i32) -> (i32, i32) {
    %c0_i32 = arith.constant 0 : i32
    %c0_i32_0 = arith.constant 0 : i32
    %c0_i32_1 = arith.constant 0 : i32
    return %c0_i32, %c0_i32_0 : i32, i32
  }
  func.func @transform_5(%arg0: i32) -> (i32, i32) {
    %c0_i32 = arith.constant 0 : i32
    %c0_i32_0 = arith.constant 0 : i32
    %c0_i32_1 = arith.constant 0 : i32
    return %c0_i32, %c0_i32_0 : i32, i32
  }
  func.func @transform_6(%arg0: i32) -> (i32, i32) {
    %c0_i32 = arith.constant 0 : i32
    %c0_i32_0 = arith.constant 0 : i32
    %c0_i32_1 = arith.constant 0 : i32
    return %c0_i32, %c0_i32_0 : i32, i32
  }
  func.func @transform_7(%arg0: i32) -> (i32, i32) {
    %c0_i32 = arith.constant 0 : i32
    %c0_i32_0 = arith.constant 0 : i32
    %c0_i32_1 = arith.constant 0 : i32
    return %c0_i32, %c0_i32_0 : i32, i32
  }
  func.func @transform_8(%arg0: i32) -> (i32, i32) {
    %c0_i32 = arith.constant 0 : i32
    %c0_i32_0 = arith.constant 0 : i32
    %c0_i32_1 = arith.constant 0 : i32
    return %c0_i32, %c0_i32_0 : i32, i32
  }
  func.func @transform_9(%arg0: i32) -> (i32, i32) {
    %c0_i32 = arith.constant 0 : i32
    %c0_i32_0 = arith.constant 0 : i32
    return %arg0, %c0_i32 : i32, i32
  }
}

</mosaic_0001>

<llo_original>
// kernel: tpu_custom_call.1
$region0: #{tpu_custom_call.1}
  #allocation0 [shape = 'u32[]', space=smem, size = 0x4, offset = 0x4, fixed_abs, tag = 'smem constant byte address 0x4 - core index']
  #allocation1 [shape = 'u32[72,128]{1,0:T(1,128)}', space=vmem, size = 0x9000, scoped, tag = 'internal scratch']
  %s0 = inlined_call_operand.hbm [shape: bf16[16,128], index: 0, kind: input, shape index: {}]
  %s1 = inlined_call_operand.hbm [shape: bf16[128,512], index: 1, kind: input, shape index: {}]
  %s2 = inlined_call_operand.hbm [shape: f32[1,512], index: 2, kind: input, shape index: {}]
  %s3 = inlined_call_operand.hbm [shape: bf16[512,512], index: 3, kind: input, shape index: {}]
  %s4 = inlined_call_operand.hbm [shape: f32[1,512], index: 4, kind: input, shape index: {}]
  %s5 = inlined_call_operand.hbm [shape: bf16[512,256], index: 5, kind: input, shape index: {}]
  %s6 = inlined_call_operand.vmem [shape: f32[1,256], index: 6, kind: input, shape index: {}]
  %s7 = inlined_call_operand.hbm [shape: bf16[256,128], index: 7, kind: input, shape index: {}]
  %s8 = inlined_call_operand.vmem [shape: f32[1,128], index: 8, kind: input, shape index: {}]
  %s9 = inlined_call_operand.hbm [shape: f32[16,128], index: 9, kind: output, shape index: {}]
  %s10 = sld [smem:[#allocation0]]
  $region74: #{tpu_custom_call.1} parent=0
    _
  %s12 = ssub.s32 1, %s10
  %s13 = scalar_select 0, %s12, %s10
  $region1: #{tpu_custom_call.1} parent=0
    #allocation2 [shape = 'u8[4096]{0}', space=vmem, size = 0x1000, scoped, tag = 'input window, operand 0, single buffered']
    #allocation3 [shape = 's32[1]{0}', space=sflag, size = 0x4, scoped, tag = 'scoped memory for tpu_custom_call.1']
    #allocation4 [shape = 's32[1]{0}', space=sflag, size = 0x4, scoped, tag = 'scoped memory for tpu_custom_call.1']
    #allocation5 [shape = 'u8[131072]{0}', space=vmem, size = 0x20000, scoped, tag = 'input window, operand 1, single buffered']
    #allocation6 [shape = 's32[1]{0}', space=sflag, size = 0x4, scoped, tag = 'scoped memory for tpu_custom_call.1']
    #allocation7 [shape = 'u8[2048]{0}', space=vmem, size = 0x800, scoped, tag = 'input window, operand 2, single buffered']
    #allocation8 [shape = 'u8[524288]{0}', space=vmem, size = 0x80000, scoped, tag = 'input window, operand 3, single buffered']
    #allocation9 [shape = 's32[1]{0}', space=sflag, size = 0x4, scoped, tag = 'scoped memory for tpu_custom_call.1']
    #allocation10 [shape = 'u8[2048]{0}', space=vmem, size = 0x800, scoped, tag = 'input window, operand 4, single buffered']
    #allocation11 [shape = 'u8[262144]{0}', space=vmem, size = 0x40000, scoped, tag = 'input window, operand 5, single buffered']
    #allocation12 [shape = 's32[1]{0}', space=sflag, size = 0x4, scoped, tag = 'scoped memory for tpu_custom_call.1']
    #allocation13 [shape = 'u8[65536]{0}', space=vmem, size = 0x10000, scoped, tag = 'input window, operand 7, single buffered']
    #allocation14 [shape = 'u8[8192]{0}', space=vmem, size = 0x2000, scoped, tag = 'output window, operand 0, single buffered']
    %14 = vsyncpa [#allocation3], 0
    %15 = vsyncpa [#allocation6], 0
    %16 = vsyncpa [#allocation9], 0
    %17 = vsyncpa [#allocation12], 0
    %18 = vsyncpa [#allocation4], 0
    // Predicated region
    $region2: #{tpu_custom_call.1} parent=1 // pred_check
      _
    $region3: #{tpu_custom_call.1} parent=1 // pred_check_branch
      %20 = sbr.rel (0) target = $region5
    $region4: #{tpu_custom_call.1} parent=1 // pred_region
      %22 = vsyncadd [#allocation3], 0
      %s23 = sshll.u32 %s0, 4
      %s24 = int_to_ptr.hbm [resolvable:$true] %s23
      %s25 = sshll.u32 [#allocation2], 4
      %s26 = int_to_ptr.vmem [resolvable:$true] %s25
      %31 = dma.hbm_to_vmem [thread:$0]  %s24, 128, %s26, [#allocation3], 64, 64, 4
    $region5: #{tpu_custom_call.1} parent=1 // pred_fallthru
      _
    // Predicated region
    $region6: #{tpu_custom_call.1} parent=1 // pred_check
      _
    $region7: #{tpu_custom_call.1} parent=1 // pred_check_branch
      %33 = sbr.rel (0) target = $region9
    $region8: #{tpu_custom_call.1} parent=1 // pred_region
      %35 = vsyncadd [#allocation6], 0
      %s36 = sshll.u32 %s1, 4
      %s37 = int_to_ptr.hbm [resolvable:$true] %s36
      %s38 = sshll.u32 [#allocation5], 4
      %s39 = int_to_ptr.vmem [resolvable:$true] %s38
      %44 = dma.hbm_to_vmem [thread:$0]  %s37, 4096, %s39, [#allocation6], 256, 256, 16
    $region9: #{tpu_custom_call.1} parent=1 // pred_fallthru
      _
    // Predicated region
    $region10: #{tpu_custom_call.1} parent=1 // pred_check
      _
    $region11: #{tpu_custom_call.1} parent=1 // pred_check_branch
      %46 = sbr.rel (0) target = $region13
    $region12: #{tpu_custom_call.1} parent=1 // pred_region
      %48 = vsyncadd [#allocation6], 0
      %s50 = sshll.u32 %s2, 4
      %s51 = int_to_ptr.hbm [resolvable:$true] %s50
      %s52 = sshll.u32 [#allocation7], 4
      %s53 = int_to_ptr.vmem [resolvable:$true] %s52
      %55 = dma.hbm_to_vmem [thread:$0]  %s51, 64, %s53, [#allocation6]
    $region13: #{tpu_custom_call.1} parent=1 // pred_fallthru
      _
    // Predicated region
    $region14: #{tpu_custom_call.1} parent=1 // pred_check
      _
    $region15: #{tpu_custom_call.1} parent=1 // pred_check_branch
      %57 = sbr.rel (0) target = $region17
    $region16: #{tpu_custom_call.1} parent=1 // pred_region
      %59 = vsyncadd [#allocation9], 0
      %s60 = sshll.u32 %s3, 4
      %s61 = int_to_ptr.hbm [resolvable:$true] %s60
      %s62 = sshll.u32 [#allocation8], 4
      %s63 = int_to_ptr.vmem [resolvable:$true] %s62
      %68 = dma.hbm_to_vmem [thread:$0]  %s61, 16384, %s63, [#allocation9], 256, 256, 16
    $region17: #{tpu_custom_call.1} parent=1 // pred_fallthru
      _
    // Predicated region
    $region18: #{tpu_custom_call.1} parent=1 // pred_check
      _
    $region19: #{tpu_custom_call.1} parent=1 // pred_check_branch
      %70 = sbr.rel (0) target = $region21
    $region20: #{tpu_custom_call.1} parent=1 // pred_region
      %72 = vsyncadd [#allocation9], 0
      %s74 = sshll.u32 %s4, 4
      %s75 = int_to_ptr.hbm [resolvable:$true] %s74
      %s76 = sshll.u32 [#allocation10], 4
      %s77 = int_to_ptr.vmem [resolvable:$true] %s76
      %79 = dma.hbm_to_vmem [thread:$0]  %s75, 64, %s77, [#allocation9]
    $region21: #{tpu_custom_call.1} parent=1 // pred_fallthru
      _
    // Predicated region
    $region22: #{tpu_custom_call.1} parent=1 // pred_check
      _
    $region23: #{tpu_custom_call.1} parent=1 // pred_check_branch
      %81 = sbr.rel (0) target = $region25
    $region24: #{tpu_custom_call.1} parent=1 // pred_region
      %83 = vsyncadd [#allocation12], 0
      %s84 = sshll.u32 %s5, 4
      %s85 = int_to_ptr.hbm [resolvable:$true] %s84
      %s86 = sshll.u32 [#allocation11], 4
      %s87 = int_to_ptr.vmem [resolvable:$true] %s86
      %92 = dma.hbm_to_vmem [thread:$0]  %s85, 8192, %s87, [#allocation12], 128, 128, 8
    $region25: #{tpu_custom_call.1} parent=1 // pred_fallthru
      _
    // Predicated region
    $region26: #{tpu_custom_call.1} parent=1 // pred_check
      _
    $region27: #{tpu_custom_call.1} parent=1 // pred_check_branch
      %94 = sbr.rel (0) target = $region29
    $region28: #{tpu_custom_call.1} parent=1 // pred_region
      _
    $region29: #{tpu_custom_call.1} parent=1 // pred_fallthru
      _
    // Predicated region
    $region30: #{tpu_custom_call.1} parent=1 // pred_check
      _
    $region31: #{tpu_custom_call.1} parent=1 // pred_check_branch
      %96 = sbr.rel (0) target = $region33
    $region32: #{tpu_custom_call.1} parent=1 // pred_region
      %98 = vsyncadd [#allocation12], 0
      %s99 = sshll.u32 %s7, 4
      %s100 = int_to_ptr.hbm [resolvable:$true] %s99
      %s101 = sshll.u32 [#allocation13], 4
      %s102 = int_to_ptr.vmem [resolvable:$true] %s101
      %107 = dma.hbm_to_vmem [thread:$0]  %s100, 2048, %s102, [#allocation12], 64, 64, 4
    $region33: #{tpu_custom_call.1} parent=1 // pred_fallthru
      _
    // Predicated region
    $region34: #{tpu_custom_call.1} parent=1 // pred_check
      _
    $region35: #{tpu_custom_call.1} parent=1 // pred_check_branch
      %109 = sbr.rel (0) target = $region37
    $region36: #{tpu_custom_call.1} parent=1 // pred_region
      _
    $region37: #{tpu_custom_call.1} parent=1 // pred_fallthru
      _
    // Predicated region
    $region38: #{tpu_custom_call.1} parent=1 // pred_check
      _
    $region39: #{tpu_custom_call.1} parent=1 // pred_check_branch
      %111 = sbr.rel (0) target = $region41
    $region40: #{tpu_custom_call.1} parent=1 // pred_region
      %113 = dma.done [#allocation3], 128
    $region41: #{tpu_custom_call.1} parent=1 // pred_fallthru
      _
    // Predicated region
    $region42: #{tpu_custom_call.1} parent=1 // pred_check
      _
    $region43: #{tpu_custom_call.1} parent=1 // pred_check_branch
      %115 = sbr.rel (0) target = $region45
    $region44: #{tpu_custom_call.1} parent=1 // pred_region
      %117 = dma.done [#allocation6], 4096
    $region45: #{tpu_custom_call.1} parent=1 // pred_fallthru
      _
    // Predicated region
    $region46: #{tpu_custom_call.1} parent=1 // pred_check
      _
    $region47: #{tpu_custom_call.1} parent=1 // pred_check_branch
      %119 = sbr.rel (0) target = $region49
    $region48: #{tpu_custom_call.1} parent=1 // pred_region
      %121 = dma.done [#allocation6], 64
    $region49: #{tpu_custom_call.1} parent=1 // pred_fallthru
      _
    // Predicated region
    $region50: #{tpu_custom_call.1} parent=1 // pred_check
      _
    $region51: #{tpu_custom_call.1} parent=1 // pred_check_branch
      %123 = sbr.rel (0) target = $region53
    $region52: #{tpu_custom_call.1} parent=1 // pred_region
      %125 = dma.done [#allocation9], 16384
    $region53: #{tpu_custom_call.1} parent=1 // pred_fallthru
      _
    // Predicated region
    $region54: #{tpu_custom_call.1} parent=1 // pred_check
      _
    $region55: #{tpu_custom_call.1} parent=1 // pred_check_branch
      %127 = sbr.rel (0) target = $region57
    $region56: #{tpu_custom_call.1} parent=1 // pred_region
      %129 = dma.done [#allocation9], 64
    $region57: #{tpu_custom_call.1} parent=1 // pred_fallthru
      _
    // Predicated region
    $region58: #{tpu_custom_call.1} parent=1 // pred_check
      _
    $region59: #{tpu_custom_call.1} parent=1 // pred_check_branch
      %131 = sbr.rel (0) target = $region61
    $region60: #{tpu_custom_call.1} parent=1 // pred_region
      %133 = dma.done [#allocation12], 8192
    $region61: #{tpu_custom_call.1} parent=1 // pred_fallthru
      _
    // Predicated region
    $region62: #{tpu_custom_call.1} parent=1 // pred_check
      _
    $region63: #{tpu_custom_call.1} parent=1 // pred_check_branch
      %135 = sbr.rel (0) target = $region65
    $region64: #{tpu_custom_call.1} parent=1 // pred_region
      %137 = dma.done [#allocation12], 2048
    $region65: #{tpu_custom_call.1} parent=1 // pred_fallthru
      _
    %v138 = vld [vmem:[#allocation2] sm:$0xf]
    %v139 = vld [vmem:[#allocation2 + $0x4] sm:$0xf]
    %v140 = vld [vmem:[#allocation5] sm:$0xff]
    %v141 = vld [vmem:[#allocation5 + $0x8] sm:$0xff]
    %v142 = vld [vmem:[#allocation5 + $0x10] sm:$0xff]
    %v143 = vld [vmem:[#allocation5 + $0x18] sm:$0xff]
    %v144 = vld [vmem:[#allocation5 + $0x20] sm:$0xff]
    %v145 = vld [vmem:[#allocation5 + $0x28] sm:$0xff]
    %v146 = vld [vmem:[#allocation5 + $0x30] sm:$0xff]
    %v147 = vld [vmem:[#allocation5 + $0x38] sm:$0xff]
    %v148 = vld [vmem:[#allocation5 + $0x40] sm:$0xff]
    %v149 = vld [vmem:[#allocation5 + $0x48] sm:$0xff]
    %v150 = vld [vmem:[#allocation5 + $0x50] sm:$0xff]
    %v151 = vld [vmem:[#allocation5 + $0x58] sm:$0xff]
    %v152 = vld [vmem:[#allocation5 + $0x60] sm:$0xff]
    %v153 = vld [vmem:[#allocation5 + $0x68] sm:$0xff]
    %v154 = vld [vmem:[#allocation5 + $0x70] sm:$0xff]
    %v155 = vld [vmem:[#allocation5 + $0x78] sm:$0xff]
    %v156 = vld [vmem:[#allocation5 + $0x80] sm:$0xff]
    %v157 = vld [vmem:[#allocation5 + $0x88] sm:$0xff]
    %v158 = vld [vmem:[#allocation5 + $0x90] sm:$0xff]
    %v159 = vld [vmem:[#allocation5 + $0x98] sm:$0xff]
    %v160 = vld [vmem:[#allocation5 + $0xa0] sm:$0xff]
    %v161 = vld [vmem:[#allocation5 + $0xa8] sm:$0xff]
    %v162 = vld [vmem:[#allocation5 + $0xb0] sm:$0xff]
    %v163 = vld [vmem:[#allocation5 + $0xb8] sm:$0xff]
    %v164 = vld [vmem:[#allocation5 + $0xc0] sm:$0xff]
    %v165 = vld [vmem:[#allocation5 + $0xc8] sm:$0xff]
    %v166 = vld [vmem:[#allocation5 + $0xd0] sm:$0xff]
    %v167 = vld [vmem:[#allocation5 + $0xd8] sm:$0xff]
    %v168 = vld [vmem:[#allocation5 + $0xe0] sm:$0xff]
    %v169 = vld [vmem:[#allocation5 + $0xe8] sm:$0xff]
    %v170 = vld [vmem:[#allocation5 + $0xf0] sm:$0xff]
    %v171 = vld [vmem:[#allocation5 + $0xf8] sm:$0xff]
    %v172 = vld [vmem:[#allocation7] sm:$0xf]
    %v174 = vperm.slane %v172, 0
    %v175 = vperm.slane %v172, 1
    %v176 = vperm.slane %v172, 2
    %v177 = vperm.slane %v172, 3
    %v184 = vunpack.c.l.b16 %v138
    %v185 = vunpack.c.l.b16 %v139
    %v186 = vpack.c.b16 %v185, %v184
    %v220 = vunpack.c.l.b16 %v140
    %v221 = vunpack.c.h.b16 %v140
    %v222 = vunpack.c.l.b16 %v141
    %v223 = vunpack.c.h.b16 %v141
    %v224 = vunpack.c.l.b16 %v142
    %v225 = vunpack.c.h.b16 %v142
    %v226 = vunpack.c.l.b16 %v143
    %v227 = vunpack.c.h.b16 %v143
    %v228 = vunpack.c.l.b16 %v144
    %v229 = vunpack.c.h.b16 %v144
    %v230 = vunpack.c.l.b16 %v145
    %v231 = vunpack.c.h.b16 %v145
    %v232 = vunpack.c.l.b16 %v146
    %v233 = vunpack.c.h.b16 %v146
    %v234 = vunpack.c.l.b16 %v147
    %v235 = vunpack.c.h.b16 %v147
    %v236 = vunpack.c.l.b16 %v148
    %v237 = vunpack.c.h.b16 %v148
    %v238 = vunpack.c.l.b16 %v149
    %v239 = vunpack.c.h.b16 %v149
    %v240 = vunpack.c.l.b16 %v150
    %v241 = vunpack.c.h.b16 %v150
    %v242 = vunpack.c.l.b16 %v151
    %v243 = vunpack.c.h.b16 %v151
    %v244 = vunpack.c.l.b16 %v152
    %v245 = vunpack.c.h.b16 %v152
    %v246 = vunpack.c.l.b16 %v153
    %v247 = vunpack.c.h.b16 %v153
    %v248 = vunpack.c.l.b16 %v154
    %v249 = vunpack.c.h.b16 %v154
    %v250 = vunpack.c.l.b16 %v155
    %v251 = vunpack.c.h.b16 %v155
    %v252 = vunpack.c.l.b16 %v156
    %v253 = vunpack.c.h.b16 %v156
    %v254 = vunpack.c.l.b16 %v157
    %v255 = vunpack.c.h.b16 %v157
    %v256 = vunpack.c.l.b16 %v158
    %v257 = vunpack.c.h.b16 %v158
    %v258 = vunpack.c.l.b16 %v159
    %v259 = vunpack.c.h.b16 %v159
    %v260 = vunpack.c.l.b16 %v160
    %v261 = vunpack.c.h.b16 %v160
    %v262 = vunpack.c.l.b16 %v161
    %v263 = vunpack.c.h.b16 %v161
    %v264 = vunpack.c.l.b16 %v162
    %v265 = vunpack.c.h.b16 %v162
    %v266 = vunpack.c.l.b16 %v163
    %v267 = vunpack.c.h.b16 %v163
    %v268 = vunpack.c.l.b16 %v164
    %v269 = vunpack.c.h.b16 %v164
    %v270 = vunpack.c.l.b16 %v165
    %v271 = vunpack.c.h.b16 %v165
    %v272 = vunpack.c.l.b16 %v166
    %v273 = vunpack.c.h.b16 %v166
    %v274 = vunpack.c.l.b16 %v167
    %v275 = vunpack.c.h.b16 %v167
    %v276 = vunpack.c.l.b16 %v168
    %v277 = vunpack.c.h.b16 %v168
    %v278 = vunpack.c.l.b16 %v169
    %v279 = vunpack.c.h.b16 %v169
    %v280 = vunpack.c.l.b16 %v170
    %v281 = vunpack.c.h.b16 %v170
    %v282 = vunpack.c.l.b16 %v171
    %v283 = vunpack.c.h.b16 %v171
    %v284 = vpack.c.b16 %v224, %v220
    %v285 = vpack.c.b16 %v225, %v221
    %v286 = vpack.c.b16 %v226, %v222
    %v287 = vpack.c.b16 %v227, %v223
    %v288 = vpack.c.b16 %v232, %v228
    %v289 = vpack.c.b16 %v233, %v229
    %v290 = vpack.c.b16 %v234, %v230
    %v291 = vpack.c.b16 %v235, %v231
    %v292 = vpack.c.b16 %v240, %v236
    %v293 = vpack.c.b16 %v241, %v237
    %v294 = vpack.c.b16 %v242, %v238
    %v295 = vpack.c.b16 %v243, %v239
    %v296 = vpack.c.b16 %v248, %v244
    %v297 = vpack.c.b16 %v249, %v245
    %v298 = vpack.c.b16 %v250, %v246
    %v299 = vpack.c.b16 %v251, %v247
    %v300 = vpack.c.b16 %v256, %v252
    %v301 = vpack.c.b16 %v257, %v253
    %v302 = vpack.c.b16 %v258, %v254
    %v303 = vpack.c.b16 %v259, %v255
    %v304 = vpack.c.b16 %v264, %v260
    %v305 = vpack.c.b16 %v265, %v261
    %v306 = vpack.c.b16 %v266, %v262
    %v307 = vpack.c.b16 %v267, %v263
    %v308 = vpack.c.b16 %v272, %v268
    %v309 = vpack.c.b16 %v273, %v269
    %v310 = vpack.c.b16 %v274, %v270
    %v311 = vpack.c.b16 %v275, %v271
    %v312 = vpack.c.b16 %v280, %v276
    %v313 = vpack.c.b16 %v281, %v277
    %v314 = vpack.c.b16 %v282, %v278
    %v315 = vpack.c.b16 %v283, %v279
    %348 = vmatpush.bf16.msra.mxu0 %v312
    %349 = vmatpush.bf16.msra.mxu0 %v308
    %350 = vmatpush.bf16.msra.mxu0 %v304
    %351 = vmatpush.bf16.msra.mxu0 %v300
    %352 = vmatpush.bf16.msra.mxu0 %v296
    %353 = vmatpush.bf16.msra.mxu0 %v292
    %354 = vmatpush.bf16.msra.mxu0 %v288
    %355 = vmatpush.bf16.msra.mxu0 %v284
    %356 = vmatmul.bf16.gmra.mxu0 %v186
    %v357 = vpop.f32.mrf.mxu0
    %v358 = vadd.f32 %v174, %v357
    %v359 = vpop.f32.mrf.mxu0
    %v360 = vadd.f32 %v174, %v359
    %361 = vdwg.mxu0
    %362 = vmatpush.bf16.msra.mxu0 %v313
    %363 = vmatpush.bf16.msra.mxu0 %v309
    %364 = vmatpush.bf16.msra.mxu0 %v305
    %365 = vmatpush.bf16.msra.mxu0 %v301
    %366 = vmatpush.bf16.msra.mxu0 %v297
    %367 = vmatpush.bf16.msra.mxu0 %v293
    %368 = vmatpush.bf16.msra.mxu0 %v289
    %369 = vmatpush.bf16.msra.mxu0 %v285
    %370 = vmatmul.bf16.gmra.mxu0 %v186
    %v371 = vpop.f32.mrf.mxu0
    %v372 = vadd.f32 %v175, %v371
    %v373 = vpop.f32.mrf.mxu0
    %v374 = vadd.f32 %v175, %v373
    %375 = vdwg.mxu0
    %376 = vmatpush.bf16.msra.mxu0 %v314
    %377 = vmatpush.bf16.msra.mxu0 %v310
    %378 = vmatpush.bf16.msra.mxu0 %v306
    %379 = vmatpush.bf16.msra.mxu0 %v302
    %380 = vmatpush.bf16.msra.mxu0 %v298
    %381 = vmatpush.bf16.msra.mxu0 %v294
    %382 = vmatpush.bf16.msra.mxu0 %v290
    %383 = vmatpush.bf16.msra.mxu0 %v286
    %384 = vmatmul.bf16.gmra.mxu0 %v186
    %v385 = vpop.f32.mrf.mxu0
    %v386 = vadd.f32 %v176, %v385
    %v387 = vpop.f32.mrf.mxu0
    %v388 = vadd.f32 %v176, %v387
    %389 = vdwg.mxu0
    %390 = vmatpush.bf16.msra.mxu0 %v315
    %391 = vmatpush.bf16.msra.mxu0 %v311
    %392 = vmatpush.bf16.msra.mxu0 %v307
    %393 = vmatpush.bf16.msra.mxu0 %v303
    %394 = vmatpush.bf16.msra.mxu0 %v299
    %395 = vmatpush.bf16.msra.mxu0 %v295
    %396 = vmatpush.bf16.msra.mxu0 %v291
    %397 = vmatpush.bf16.msra.mxu0 %v287
    %398 = vmatmul.bf16.gmra.mxu0 %v186
    %v399 = vpop.f32.mrf.mxu0
    %v400 = vadd.f32 %v177, %v399
    %v401 = vpop.f32.mrf.mxu0
    %v402 = vadd.f32 %v177, %v401
    %403 = vdwg.mxu0
    %v404 = vmax.f32 %v358, 0.0
    %v405 = vmax.f32 %v372, 0.0
    %v406 = vmax.f32 %v386, 0.0
    %v407 = vmax.f32 %v400, 0.0
    %v408 = vmax.f32 %v360, 0.0
    %v409 = vmax.f32 %v374, 0.0
    %v410 = vmax.f32 %v388, 0.0
    %v411 = vmax.f32 %v402, 0.0
    %v412 = vpack.c.bf16 %v408, %v404
    %v413 = vpack.c.bf16 %v409, %v405
    %v414 = vpack.c.bf16 %v410, %v406
    %v415 = vpack.c.bf16 %v411, %v407
    %v416 = vld [vmem:[#allocation8] sm:$0xff]
    %v417 = vld [vmem:[#allocation8 + $0x8] sm:$0xff]
    %v418 = vld [vmem:[#allocation8 + $0x10] sm:$0xff]
    %v419 = vld [vmem:[#allocation8 + $0x18] sm:$0xff]
    %v420 = vld [vmem:[#allocation8 + $0x20] sm:$0xff]
    %v421 = vld [vmem:[#allocation8 + $0x28] sm:$0xff]
    %v422 = vld [vmem:[#allocation8 + $0x30] sm:$0xff]
    %v423 = vld [vmem:[#allocation8 + $0x38] sm:$0xff]
    %v424 = vld [vmem:[#allocation8 + $0x40] sm:$0xff]
    %v425 = vld [vmem:[#allocation8 + $0x48] sm:$0xff]
    %v426 = vld [vmem:[#allocation8 + $0x50] sm:$0xff]
    %v427 = vld [vmem:[#allocation8 + $0x58] sm:$0xff]
    %v428 = vld [vmem:[#allocation8 + $0x60] sm:$0xff]
    %v429 = vld [vmem:[#allocation8 + $0x68] sm:$0xff]
    %v430 = vld [vmem:[#allocation8 + $0x70] sm:$0xff]
    %v431 = vld [vmem:[#allocation8 + $0x78] sm:$0xff]
    %v432 = vld [vmem:[#allocation8 + $0x80] sm:$0xff]
    %v433 = vld [vmem:[#allocation8 + $0x88] sm:$0xff]
    %v434 = vld [vmem:[#allocation8 + $0x90] sm:$0xff]
    %v435 = vld [vmem:[#allocation8 + $0x98] sm:$0xff]
    %v436 = vld [vmem:[#allocation8 + $0xa0] sm:$0xff]
    %v437 = vld [vmem:[#allocation8 + $0xa8] sm:$0xff]
    %v438 = vld [vmem:[#allocation8 + $0xb0] sm:$0xff]
    %v439 = vld [vmem:[#allocation8 + $0xb8] sm:$0xff]
    %v440 = vld [vmem:[#allocation8 + $0xc0] sm:$0xff]
    %v441 = vld [vmem:[#allocation8 + $0xc8] sm:$0xff]
    %v442 = vld [vmem:[#allocation8 + $0xd0] sm:$0xff]
    %v443 = vld [vmem:[#allocation8 + $0xd8] sm:$0xff]
    %v444 = vld [vmem:[#allocation8 + $0xe0] sm:$0xff]
    %v445 = vld [vmem:[#allocation8 + $0xe8] sm:$0xff]
    %v446 = vld [vmem:[#allocation8 + $0xf0] sm:$0xff]
    %v447 = vld [vmem:[#allocation8 + $0xf8] sm:$0xff]
    %v448 = vld [vmem:[#allocation8 + $0x100] sm:$0xff]
    %v449 = vld [vmem:[#allocation8 + $0x108] sm:$0xff]
    %v450 = vld [vmem:[#allocation8 + $0x110] sm:$0xff]
    %v451 = vld [vmem:[#allocation8 + $0x118] sm:$0xff]
    %v452 = vld [vmem:[#allocation8 + $0x120] sm:$0xff]
    %v453 = vld [vmem:[#allocation8 + $0x128] sm:$0xff]
    %v454 = vld [vmem:[#allocation8 + $0x130] sm:$0xff]
    %v455 = vld [vmem:[#allocation8 + $0x138] sm:$0xff]
    %v456 = vld [vmem:[#allocation8 + $0x140] sm:$0xff]
    %v457 = vld [vmem:[#allocation8 + $0x148] sm:$0xff]
    %v458 = vld [vmem:[#allocation8 + $0x150] sm:$0xff]
    %v459 = vld [vmem:[#allocation8 + $0x158] sm:$0xff]
    %v460 = vld [vmem:[#allocation8 + $0x160] sm:$0xff]
    %v461 = vld [vmem:[#allocation8 + $0x168] sm:$0xff]
    %v462 = vld [vmem:[#allocation8 + $0x170] sm:$0xff]
    %v463 = vld [vmem:[#allocation8 + $0x178] sm:$0xff]
    %v464 = vld [vmem:[#allocation8 + $0x180] sm:$0xff]
    %v465 = vld [vmem:[#allocation8 + $0x188] sm:$0xff]
    %v466 = vld [vmem:[#allocation8 + $0x190] sm:$0xff]
    %v467 = vld [vmem:[#allocation8 + $0x198] sm:$0xff]
    %v468 = vld [vmem:[#allocation8 + $0x1a0] sm:$0xff]
    %v469 = vld [vmem:[#allocation8 + $0x1a8] sm:$0xff]
    %v470 = vld [vmem:[#allocation8 + $0x1b0] sm:$0xff]
    %v471 = vld [vmem:[#allocation8 + $0x1b8] sm:$0xff]
    %v472 = vld [vmem:[#allocation8 + $0x1c0] sm:$0xff]
    %v473 = vld [vmem:[#allocation8 + $0x1c8] sm:$0xff]
    %v474 = vld [vmem:[#allocation8 + $0x1d0] sm:$0xff]
    %v475 = vld [vmem:[#allocation8 + $0x1d8] sm:$0xff]
    %v476 = vld [vmem:[#allocation8 + $0x1e0] sm:$0xff]
    %v477 = vld [vmem:[#allocation8 + $0x1e8] sm:$0xff]
    %v478 = vld [vmem:[#allocation8 + $0x1f0] sm:$0xff]
    %v479 = vld [vmem:[#allocation8 + $0x1f8] sm:$0xff]
    %v480 = vld [vmem:[#allocation8 + $0x200] sm:$0xff]
    %v481 = vld [vmem:[#allocation8 + $0x208] sm:$0xff]
    %v482 = vld [vmem:[#allocation8 + $0x210] sm:$0xff]
    %v483 = vld [vmem:[#allocation8 + $0x218] sm:$0xff]
    %v484 = vld [vmem:[#allocation8 + $0x220] sm:$0xff]
    %v485 = vld [vmem:[#allocation8 + $0x228] sm:$0xff]
    %v486 = vld [vmem:[#allocation8 + $0x230] sm:$0xff]
    %v487 = vld [vmem:[#allocation8 + $0x238] sm:$0xff]
    %v488 = vld [vmem:[#allocation8 + $0x240] sm:$0xff]
    %v489 = vld [vmem:[#allocation8 + $0x248] sm:$0xff]
    %v490 = vld [vmem:[#allocation8 + $0x250] sm:$0xff]
    %v491 = vld [vmem:[#allocation8 + $0x258] sm:$0xff]
    %v492 = vld [vmem:[#allocation8 + $0x260] sm:$0xff]
    %v493 = vld [vmem:[#allocation8 + $0x268] sm:$0xff]
    %v494 = vld [vmem:[#allocation8 + $0x270] sm:$0xff]
    %v495 = vld [vmem:[#allocation8 + $0x278] sm:$0xff]
    %v496 = vld [vmem:[#allocation8 + $0x280] sm:$0xff]
    %v497 = vld [vmem:[#allocation8 + $0x288] sm:$0xff]
    %v498 = vld [vmem:[#allocation8 + $0x290] sm:$0xff]
    %v499 = vld [vmem:[#allocation8 + $0x298] sm:$0xff]
    %v500 = vld [vmem:[#allocation8 + $0x2a0] sm:$0xff]
    %v501 = vld [vmem:[#allocation8 + $0x2a8] sm:$0xff]
    %v502 = vld [vmem:[#allocation8 + $0x2b0] sm:$0xff]
    %v503 = vld [vmem:[#allocation8 + $0x2b8] sm:$0xff]
    %v504 = vld [vmem:[#allocation8 + $0x2c0] sm:$0xff]
    %v505 = vld [vmem:[#allocation8 + $0x2c8] sm:$0xff]
    %v506 = vld [vmem:[#allocation8 + $0x2d0] sm:$0xff]
    %v507 = vld [vmem:[#allocation8 + $0x2d8] sm:$0xff]
    %v508 = vld [vmem:[#allocation8 + $0x2e0] sm:$0xff]
    %v509 = vld [vmem:[#allocation8 + $0x2e8] sm:$0xff]
    %v510 = vld [vmem:[#allocation8 + $0x2f0] sm:$0xff]
    %v511 = vld [vmem:[#allocation8 + $0x2f8] sm:$0xff]
    %v512 = vld [vmem:[#allocation8 + $0x300] sm:$0xff]
    %v513 = vld [vmem:[#allocation8 + $0x308] sm:$0xff]
    %v514 = vld [vmem:[#allocation8 + $0x310] sm:$0xff]
    %v515 = vld [vmem:[#allocation8 + $0x318] sm:$0xff]
    %v516 = vld [vmem:[#allocation8 + $0x320] sm:$0xff]
    %v517 = vld [vmem:[#allocation8 + $0x328] sm:$0xff]
    %v518 = vld [vmem:[#allocation8 + $0x330] sm:$0xff]
    %v519 = vld [vmem:[#allocation8 + $0x338] sm:$0xff]
    %v520 = vld [vmem:[#allocation8 + $0x340] sm:$0xff]
    %v521 = vld [vmem:[#allocation8 + $0x348] sm:$0xff]
    %v522 = vld [vmem:[#allocation8 + $0x350] sm:$0xff]
    %v523 = vld [vmem:[#allocation8 + $0x358] sm:$0xff]
    %v524 = vld [vmem:[#allocation8 + $0x360] sm:$0xff]
    %v525 = vld [vmem:[#allocation8 + $0x368] sm:$0xff]
    %v526 = vld [vmem:[#allocation8 + $0x370] sm:$0xff]
    %v527 = vld [vmem:[#allocation8 + $0x378] sm:$0xff]
    %v528 = vld [vmem:[#allocation8 + $0x380] sm:$0xff]
    %v529 = vld [vmem:[#allocation8 + $0x388] sm:$0xff]
    %v530 = vld [vmem:[#allocation8 + $0x390] sm:$0xff]
    %v531 = vld [vmem:[#allocation8 + $0x398] sm:$0xff]
    %v532 = vld [vmem:[#allocation8 + $0x3a0] sm:$0xff]
    %v533 = vld [vmem:[#allocation8 + $0x3a8] sm:$0xff]
    %v534 = vld [vmem:[#allocation8 + $0x3b0] sm:$0xff]
    %v535 = vld [vmem:[#allocation8 + $0x3b8] sm:$0xff]
    %v536 = vld [vmem:[#allocation8 + $0x3c0] sm:$0xff]
    %v537 = vld [vmem:[#allocation8 + $0x3c8] sm:$0xff]
    %v538 = vld [vmem:[#allocation8 + $0x3d0] sm:$0xff]
    %v539 = vld [vmem:[#allocation8 + $0x3d8] sm:$0xff]
    %v540 = vld [vmem:[#allocation8 + $0x3e0] sm:$0xff]
    %v541 = vld [vmem:[#allocation8 + $0x3e8] sm:$0xff]
    %v542 = vld [vmem:[#allocation8 + $0x3f0] sm:$0xff]
    %v543 = vld [vmem:[#allocation8 + $0x3f8] sm:$0xff]
    %v544 = vld [vmem:[#allocation10] sm:$0xf]
    %v546 = vperm.slane %v544, 0
    %v547 = vperm.slane %v544, 1
    %v548 = vperm.slane %v544, 2
    %v549 = vperm.slane %v544, 3
    %v682 = vunpack.c.l.b16 %v416
    %v683 = vunpack.c.h.b16 %v416
    %v684 = vunpack.c.l.b16 %v417
    %v685 = vunpack.c.h.b16 %v417
    %v686 = vunpack.c.l.b16 %v418
    %v687 = vunpack.c.h.b16 %v418
    %v688 = vunpack.c.l.b16 %v419
    %v689 = vunpack.c.h.b16 %v419
    %v690 = vunpack.c.l.b16 %v420
    %v691 = vunpack.c.h.b16 %v420
    %v692 = vunpack.c.l.b16 %v421
    %v693 = vunpack.c.h.b16 %v421
    %v694 = vunpack.c.l.b16 %v422
    %v695 = vunpack.c.h.b16 %v422
    %v696 = vunpack.c.l.b16 %v423
    %v697 = vunpack.c.h.b16 %v423
    %v698 = vunpack.c.l.b16 %v424
    %v699 = vunpack.c.h.b16 %v424
    %v700 = vunpack.c.l.b16 %v425
    %v701 = vunpack.c.h.b16 %v425
    %v702 = vunpack.c.l.b16 %v426
    %v703 = vunpack.c.h.b16 %v426
    %v704 = vunpack.c.l.b16 %v427
    %v705 = vunpack.c.h.b16 %v427
    %v706 = vunpack.c.l.b16 %v428
    %v707 = vunpack.c.h.b16 %v428
    %v708 = vunpack.c.l.b16 %v429
    %v709 = vunpack.c.h.b16 %v429
    %v710 = vunpack.c.l.b16 %v430
    %v711 = vunpack.c.h.b16 %v430
    %v712 = vunpack.c.l.b16 %v431
    %v713 = vunpack.c.h.b16 %v431
    %v714 = vunpack.c.l.b16 %v432
    %v715 = vunpack.c.h.b16 %v432
    %v716 = vunpack.c.l.b16 %v433
    %v717 = vunpack.c.h.b16 %v433
    %v718 = vunpack.c.l.b16 %v434
    %v719 = vunpack.c.h.b16 %v434
    %v720 = vunpack.c.l.b16 %v435
    %v721 = vunpack.c.h.b16 %v435
    %v722 = vunpack.c.l.b16 %v436
    %v723 = vunpack.c.h.b16 %v436
    %v724 = vunpack.c.l.b16 %v437
    %v725 = vunpack.c.h.b16 %v437
    %v726 = vunpack.c.l.b16 %v438
    %v727 = vunpack.c.h.b16 %v438
    %v728 = vunpack.c.l.b16 %v439
    %v729 = vunpack.c.h.b16 %v439
    %v730 = vunpack.c.l.b16 %v440
    %v731 = vunpack.c.h.b16 %v440
    %v732 = vunpack.c.l.b16 %v441
    %v733 = vunpack.c.h.b16 %v441
    %v734 = vunpack.c.l.b16 %v442
    %v735 = vunpack.c.h.b16 %v442
    %v736 = vunpack.c.l.b16 %v443
    %v737 = vunpack.c.h.b16 %v443
    %v738 = vunpack.c.l.b16 %v444
    %v739 = vunpack.c.h.b16 %v444
    %v740 = vunpack.c.l.b16 %v445
    %v741 = vunpack.c.h.b16 %v445
    %v742 = vunpack.c.l.b16 %v446
    %v743 = vunpack.c.h.b16 %v446
    %v744 = vunpack.c.l.b16 %v447
    %v745 = vunpack.c.h.b16 %v447
    %v746 = vunpack.c.l.b16 %v448
    %v747 = vunpack.c.h.b16 %v448
    %v748 = vunpack.c.l.b16 %v449
    %v749 = vunpack.c.h.b16 %v449
    %v750 = vunpack.c.l.b16 %v450
    %v751 = vunpack.c.h.b16 %v450
    %v752 = vunpack.c.l.b16 %v451
    %v753 = vunpack.c.h.b16 %v451
    %v754 = vunpack.c.l.b16 %v452
    %v755 = vunpack.c.h.b16 %v452
    %v756 = vunpack.c.l.b16 %v453
    %v757 = vunpack.c.h.b16 %v453
    %v758 = vunpack.c.l.b16 %v454
    %v759 = vunpack.c.h.b16 %v454
    %v760 = vunpack.c.l.b16 %v455
    %v761 = vunpack.c.h.b16 %v455
    %v762 = vunpack.c.l.b16 %v456
    %v763 = vunpack.c.h.b16 %v456
    %v764 = vunpack.c.l.b16 %v457
    %v765 = vunpack.c.h.b16 %v457
    %v766 = vunpack.c.l.b16 %v458
    %v767 = vunpack.c.h.b16 %v458
    %v768 = vunpack.c.l.b16 %v459
    %v769 = vunpack.c.h.b16 %v459
    %v770 = vunpack.c.l.b16 %v460
    %v771 = vunpack.c.h.b16 %v460
    %v772 = vunpack.c.l.b16 %v461
    %v773 = vunpack.c.h.b16 %v461
    %v774 = vunpack.c.l.b16 %v462
    %v775 = vunpack.c.h.b16 %v462
    %v776 = vunpack.c.l.b16 %v463
    %v777 = vunpack.c.h.b16 %v463
    %v778 = vunpack.c.l.b16 %v464
    %v779 = vunpack.c.h.b16 %v464
    %v780 = vunpack.c.l.b16 %v465
    %v781 = vunpack.c.h.b16 %v465
    %v782 = vunpack.c.l.b16 %v466
    %v783 = vunpack.c.h.b16 %v466
    %v784 = vunpack.c.l.b16 %v467
    %v785 = vunpack.c.h.b16 %v467
    %v786 = vunpack.c.l.b16 %v468
    %v787 = vunpack.c.h.b16 %v468
    %v788 = vunpack.c.l.b16 %v469
    %v789 = vunpack.c.h.b16 %v469
    %v790 = vunpack.c.l.b16 %v470
    %v791 = vunpack.c.h.b16 %v470
    %v792 = vunpack.c.l.b16 %v471
    %v793 = vunpack.c.h.b16 %v471
    %v794 = vunpack.c.l.b16 %v472
    %v795 = vunpack.c.h.b16 %v472
    %v796 = vunpack.c.l.b16 %v473
    %v797 = vunpack.c.h.b16 %v473
    %v798 = vunpack.c.l.b16 %v474
    %v799 = vunpack.c.h.b16 %v474
    %v800 = vunpack.c.l.b16 %v475
    %v801 = vunpack.c.h.b16 %v475
    %v802 = vunpack.c.l.b16 %v476
    %v803 = vunpack.c.h.b16 %v476
    %v804 = vunpack.c.l.b16 %v477
    %v805 = vunpack.c.h.b16 %v477
    %v806 = vunpack.c.l.b16 %v478
    %v807 = vunpack.c.h.b16 %v478
    %v808 = vunpack.c.l.b16 %v479
    %v809 = vunpack.c.h.b16 %v479
    %v810 = vunpack.c.l.b16 %v480
    %v811 = vunpack.c.h.b16 %v480
    %v812 = vunpack.c.l.b16 %v481
    %v813 = vunpack.c.h.b16 %v481
    %v814 = vunpack.c.l.b16 %v482
    %v815 = vunpack.c.h.b16 %v482
    %v816 = vunpack.c.l.b16 %v483
    %v817 = vunpack.c.h.b16 %v483
    %v818 = vunpack.c.l.b16 %v484
    %v819 = vunpack.c.h.b16 %v484
    %v820 = vunpack.c.l.b16 %v485
    %v821 = vunpack.c.h.b16 %v485
    %v822 = vunpack.c.l.b16 %v486
    %v823 = vunpack.c.h.b16 %v486
    %v824 = vunpack.c.l.b16 %v487
    %v825 = vunpack.c.h.b16 %v487
    %v826 = vunpack.c.l.b16 %v488
    %v827 = vunpack.c.h.b16 %v488
    %v828 = vunpack.c.l.b16 %v489
    %v829 = vunpack.c.h.b16 %v489
    %v830 = vunpack.c.l.b16 %v490
    %v831 = vunpack.c.h.b16 %v490
    %v832 = vunpack.c.l.b16 %v491
    %v833 = vunpack.c.h.b16 %v491
    %v834 = vunpack.c.l.b16 %v492
    %v835 = vunpack.c.h.b16 %v492
    %v836 = vunpack.c.l.b16 %v493
    %v837 = vunpack.c.h.b16 %v493
    %v838 = vunpack.c.l.b16 %v494
    %v839 = vunpack.c.h.b16 %v494
    %v840 = vunpack.c.l.b16 %v495
    %v841 = vunpack.c.h.b16 %v495
    %v842 = vunpack.c.l.b16 %v496
    %v843 = vunpack.c.h.b16 %v496
    %v844 = vunpack.c.l.b16 %v497
    %v845 = vunpack.c.h.b16 %v497
    %v846 = vunpack.c.l.b16 %v498
    %v847 = vunpack.c.h.b16 %v498
    %v848 = vunpack.c.l.b16 %v499
    %v849 = vunpack.c.h.b16 %v499
    %v850 = vunpack.c.l.b16 %v500
    %v851 = vunpack.c.h.b16 %v500
    %v852 = vunpack.c.l.b16 %v501
    %v853 = vunpack.c.h.b16 %v501
    %v854 = vunpack.c.l.b16 %v502
    %v855 = vunpack.c.h.b16 %v502
    %v856 = vunpack.c.l.b16 %v503
    %v857 = vunpack.c.h.b16 %v503
    %v858 = vunpack.c.l.b16 %v504
    %v859 = vunpack.c.h.b16 %v504
    %v860 = vunpack.c.l.b16 %v505
    %v861 = vunpack.c.h.b16 %v505
    %v862 = vunpack.c.l.b16 %v506
    %v863 = vunpack.c.h.b16 %v506
    %v864 = vunpack.c.l.b16 %v507
    %v865 = vunpack.c.h.b16 %v507
    %v866 = vunpack.c.l.b16 %v508
    %v867 = vunpack.c.h.b16 %v508
    %v868 = vunpack.c.l.b16 %v509
    %v869 = vunpack.c.h.b16 %v509
    %v870 = vunpack.c.l.b16 %v510
    %v871 = vunpack.c.h.b16 %v510
    %v872 = vunpack.c.l.b16 %v511
    %v873 = vunpack.c.h.b16 %v511
    %v874 = vunpack.c.l.b16 %v512
    %v875 = vunpack.c.h.b16 %v512
    %v876 = vunpack.c.l.b16 %v513
    %v877 = vunpack.c.h.b16 %v513
    %v878 = vunpack.c.l.b16 %v514
    %v879 = vunpack.c.h.b16 %v514
    %v880 = vunpack.c.l.b16 %v515
    %v881 = vunpack.c.h.b16 %v515
    %v882 = vunpack.c.l.b16 %v516
    %v883 = vunpack.c.h.b16 %v516
    %v884 = vunpack.c.l.b16 %v517
    %v885 = vunpack.c.h.b16 %v517
    %v886 = vunpack.c.l.b16 %v518
    %v887 = vunpack.c.h.b16 %v518
    %v888 = vunpack.c.l.b16 %v519
    %v889 = vunpack.c.h.b16 %v519
    %v890 = vunpack.c.l.b16 %v520
    %v891 = vunpack.c.h.b16 %v520
    %v892 = vunpack.c.l.b16 %v521
    %v893 = vunpack.c.h.b16 %v521
    %v894 = vunpack.c.l.b16 %v522
    %v895 = vunpack.c.h.b16 %v522
    %v896 = vunpack.c.l.b16 %v523
    %v897 = vunpack.c.h.b16 %v523
    %v898 = vunpack.c.l.b16 %v524
    %v899 = vunpack.c.h.b16 %v524
    %v900 = vunpack.c.l.b16 %v525
    %v901 = vunpack.c.h.b16 %v525
    %v902 = vunpack.c.l.b16 %v526
    %v903 = vunpack.c.h.b16 %v526
    %v904 = vunpack.c.l.b16 %v527
    %v905 = vunpack.c.h.b16 %v527
    %v906 = vunpack.c.l.b16 %v528
    %v907 = vunpack.c.h.b16 %v528
    %v908 = vunpack.c.l.b16 %v529
    %v909 = vunpack.c.h.b16 %v529
    %v910 = vunpack.c.l.b16 %v530
    %v911 = vunpack.c.h.b16 %v530
    %v912 = vunpack.c.l.b16 %v531
    %v913 = vunpack.c.h.b16 %v531
    %v914 = vunpack.c.l.b16 %v532
    %v915 = vunpack.c.h.b16 %v532
    %v916 = vunpack.c.l.b16 %v533
    %v917 = vunpack.c.h.b16 %v533
    %v918 = vunpack.c.l.b16 %v534
    %v919 = vunpack.c.h.b16 %v534
    %v920 = vunpack.c.l.b16 %v535
    %v921 = vunpack.c.h.b16 %v535
    %v922 = vunpack.c.l.b16 %v536
    %v923 = vunpack.c.h.b16 %v536
    %v924 = vunpack.c.l.b16 %v537
    %v925 = vunpack.c.h.b16 %v537
    %v926 = vunpack.c.l.b16 %v538
    %v927 = vunpack.c.h.b16 %v538
    %v928 = vunpack.c.l.b16 %v539
    %v929 = vunpack.c.h.b16 %v539
    %v930 = vunpack.c.l.b16 %v540
    %v931 = vunpack.c.h.b16 %v540
    %v932 = vunpack.c.l.b16 %v541
    %v933 = vunpack.c.h.b16 %v541
    %v934 = vunpack.c.l.b16 %v542
    %v935 = vunpack.c.h.b16 %v542
    %v936 = vunpack.c.l.b16 %v543
    %v937 = vunpack.c.h.b16 %v543
    %v938 = vpack.c.b16 %v686, %v682
    %v939 = vpack.c.b16 %v687, %v683
    %v940 = vpack.c.b16 %v688, %v684
    %v941 = vpack.c.b16 %v689, %v685
    %v942 = vpack.c.b16 %v694, %v690
    %v943 = vpack.c.b16 %v695, %v691
    %v944 = vpack.c.b16 %v696, %v692
    %v945 = vpack.c.b16 %v697, %v693
    %v946 = vpack.c.b16 %v702, %v698
    %v947 = vpack.c.b16 %v703, %v699
    %v948 = vpack.c.b16 %v704, %v700
    %v949 = vpack.c.b16 %v705, %v701
    %v950 = vpack.c.b16 %v710, %v706
    %v951 = vpack.c.b16 %v711, %v707
    %v952 = vpack.c.b16 %v712, %v708
    %v953 = vpack.c.b16 %v713, %v709
    %v954 = vpack.c.b16 %v718, %v714
    %v955 = vpack.c.b16 %v719, %v715
    %v956 = vpack.c.b16 %v720, %v716
    %v957 = vpack.c.b16 %v721, %v717
    %v958 = vpack.c.b16 %v726, %v722
    %v959 = vpack.c.b16 %v727, %v723
    %v960 = vpack.c.b16 %v728, %v724
    %v961 = vpack.c.b16 %v729, %v725
    %v962 = vpack.c.b16 %v734, %v730
    %v963 = vpack.c.b16 %v735, %v731
    %v964 = vpack.c.b16 %v736, %v732
    %v965 = vpack.c.b16 %v737, %v733
    %v966 = vpack.c.b16 %v742, %v738
    %v967 = vpack.c.b16 %v743, %v739
    %v968 = vpack.c.b16 %v744, %v740
    %v969 = vpack.c.b16 %v745, %v741
    %v970 = vpack.c.b16 %v750, %v746
    %v971 = vpack.c.b16 %v751, %v747
    %v972 = vpack.c.b16 %v752, %v748
    %v973 = vpack.c.b16 %v753, %v749
    %v974 = vpack.c.b16 %v758, %v754
    %v975 = vpack.c.b16 %v759, %v755
    %v976 = vpack.c.b16 %v760, %v756
    %v977 = vpack.c.b16 %v761, %v757
    %v978 = vpack.c.b16 %v766, %v762
    %v979 = vpack.c.b16 %v767, %v763
    %v980 = vpack.c.b16 %v768, %v764
    %v981 = vpack.c.b16 %v769, %v765
    %v982 = vpack.c.b16 %v774, %v770
    %v983 = vpack.c.b16 %v775, %v771
    %v984 = vpack.c.b16 %v776, %v772
    %v985 = vpack.c.b16 %v777, %v773
    %v986 = vpack.c.b16 %v782, %v778
    %v987 = vpack.c.b16 %v783, %v779
    %v988 = vpack.c.b16 %v784, %v780
    %v989 = vpack.c.b16 %v785, %v781
    %v990 = vpack.c.b16 %v790, %v786
    %v991 = vpack.c.b16 %v791, %v787
    %v992 = vpack.c.b16 %v792, %v788
    %v993 = vpack.c.b16 %v793, %v789
    %v994 = vpack.c.b16 %v798, %v794
    %v995 = vpack.c.b16 %v799, %v795
    %v996 = vpack.c.b16 %v800, %v796
    %v997 = vpack.c.b16 %v801, %v797
    %v998 = vpack.c.b16 %v806, %v802
    %v999 = vpack.c.b16 %v807, %v803
    %v1000 = vpack.c.b16 %v808, %v804
    %v1001 = vpack.c.b16 %v809, %v805
    %v1002 = vpack.c.b16 %v814, %v810
    %v1003 = vpack.c.b16 %v815, %v811
    %v1004 = vpack.c.b16 %v816, %v812
    %v1005 = vpack.c.b16 %v817, %v813
    %v1006 = vpack.c.b16 %v822, %v818
    %v1007 = vpack.c.b16 %v823, %v819
    %v1008 = vpack.c.b16 %v824, %v820
    %v1009 = vpack.c.b16 %v825, %v821
    %v1010 = vpack.c.b16 %v830, %v826
    %v1011 = vpack.c.b16 %v831, %v827
    %v1012 = vpack.c.b16 %v832, %v828
    %v1013 = vpack.c.b16 %v833, %v829
    %v1014 = vpack.c.b16 %v838, %v834
    %v1015 = vpack.c.b16 %v839, %v835
    %v1016 = vpack.c.b16 %v840, %v836
    %v1017 = vpack.c.b16 %v841, %v837
    %v1018 = vpack.c.b16 %v846, %v842
    %v1019 = vpack.c.b16 %v847, %v843
    %v1020 = vpack.c.b16 %v848, %v844
    %v1021 = vpack.c.b16 %v849, %v845
    %v1022 = vpack.c.b16 %v854, %v850
    %v1023 = vpack.c.b16 %v855, %v851
    %v1024 = vpack.c.b16 %v856, %v852
    %v1025 = vpack.c.b16 %v857, %v853
    %v1026 = vpack.c.b16 %v862, %v858
    %v1027 = vpack.c.b16 %v863, %v859
    %v1028 = vpack.c.b16 %v864, %v860
    %v1029 = vpack.c.b16 %v865, %v861
    %v1030 = vpack.c.b16 %v870, %v866
    %v1031 = vpack.c.b16 %v871, %v867
    %v1032 = vpack.c.b16 %v872, %v868
    %v1033 = vpack.c.b16 %v873, %v869
    %v1034 = vpack.c.b16 %v878, %v874
    %v1035 = vpack.c.b16 %v879, %v875
    %v1036 = vpack.c.b16 %v880, %v876
    %v1037 = vpack.c.b16 %v881, %v877
    %v1038 = vpack.c.b16 %v886, %v882
    %v1039 = vpack.c.b16 %v887, %v883
    %v1040 = vpack.c.b16 %v888, %v884
    %v1041 = vpack.c.b16 %v889, %v885
    %v1042 = vpack.c.b16 %v894, %v890
    %v1043 = vpack.c.b16 %v895, %v891
    %v1044 = vpack.c.b16 %v896, %v892
    %v1045 = vpack.c.b16 %v897, %v893
    %v1046 = vpack.c.b16 %v902, %v898
    %v1047 = vpack.c.b16 %v903, %v899
    %v1048 = vpack.c.b16 %v904, %v900
    %v1049 = vpack.c.b16 %v905, %v901
    %v1050 = vpack.c.b16 %v910, %v906
    %v1051 = vpack.c.b16 %v911, %v907
    %v1052 = vpack.c.b16 %v912, %v908
    %v1053 = vpack.c.b16 %v913, %v909
    %v1054 = vpack.c.b16 %v918, %v914
    %v1055 = vpack.c.b16 %v919, %v915
    %v1056 = vpack.c.b16 %v920, %v916
    %v1057 = vpack.c.b16 %v921, %v917
    %v1058 = vpack.c.b16 %v926, %v922
    %v1059 = vpack.c.b16 %v927, %v923
    %v1060 = vpack.c.b16 %v928, %v924
    %v1061 = vpack.c.b16 %v929, %v925
    %v1062 = vpack.c.b16 %v934, %v930
    %v1063 = vpack.c.b16 %v935, %v931
    %v1064 = vpack.c.b16 %v936, %v932
    %v1065 = vpack.c.b16 %v937, %v933
    %1194 = vmatpush.bf16.msra.mxu0 %v966
    %1195 = vmatpush.bf16.msra.mxu0 %v962
    %1196 = vmatpush.bf16.msra.mxu0 %v958
    %1197 = vmatpush.bf16.msra.mxu0 %v954
    %1198 = vmatpush.bf16.msra.mxu0 %v950
    %1199 = vmatpush.bf16.msra.mxu0 %v946
    %1200 = vmatpush.bf16.msra.mxu0 %v942
    %1201 = vmatpush.bf16.msra.mxu0 %v938
    %1202 = vmatmul.bf16.gmra.mxu0 %v412
    %v1203 = vpop.f32.mrf.mxu0
    %v1204 = vadd.f32 %v546, %v1203
    %v1205 = vpop.f32.mrf.mxu0
    %v1206 = vadd.f32 %v546, %v1205
    %1207 = vdwg.mxu0
    %1208 = vmatpush.bf16.msra.mxu0 %v998
    %1209 = vmatpush.bf16.msra.mxu0 %v994
    %1210 = vmatpush.bf16.msra.mxu0 %v990
    %1211 = vmatpush.bf16.msra.mxu0 %v986
    %1212 = vmatpush.bf16.msra.mxu0 %v982
    %1213 = vmatpush.bf16.msra.mxu0 %v978
    %1214 = vmatpush.bf16.msra.mxu0 %v974
    %1215 = vmatpush.bf16.msra.mxu0 %v970
    %1216 = vmatmul.bf16.gmra.mxu0 %v413
    %v1217 = vpop.f32.mrf.mxu0
    %v1218 = vadd.f32 %v1204, %v1217
    %v1219 = vpop.f32.mrf.mxu0
    %v1220 = vadd.f32 %v1206, %v1219
    %1221 = vdwg.mxu0
    %1222 = vmatpush.bf16.msra.mxu0 %v1030
    %1223 = vmatpush.bf16.msra.mxu0 %v1026
    %1224 = vmatpush.bf16.msra.mxu0 %v1022
    %1225 = vmatpush.bf16.msra.mxu0 %v1018
    %1226 = vmatpush.bf16.msra.mxu0 %v1014
    %1227 = vmatpush.bf16.msra.mxu0 %v1010
    %1228 = vmatpush.bf16.msra.mxu0 %v1006
    %1229 = vmatpush.bf16.msra.mxu0 %v1002
    %1230 = vmatmul.bf16.gmra.mxu0 %v414
    %v1231 = vpop.f32.mrf.mxu0
    %v1232 = vadd.f32 %v1218, %v1231
    %v1233 = vpop.f32.mrf.mxu0
    %v1234 = vadd.f32 %v1220, %v1233
    %1235 = vdwg.mxu0
    %1236 = vmatpush.bf16.msra.mxu0 %v1062
    %1237 = vmatpush.bf16.msra.mxu0 %v1058
    %1238 = vmatpush.bf16.msra.mxu0 %v1054
    %1239 = vmatpush.bf16.msra.mxu0 %v1050
    %1240 = vmatpush.bf16.msra.mxu0 %v1046
    %1241 = vmatpush.bf16.msra.mxu0 %v1042
    %1242 = vmatpush.bf16.msra.mxu0 %v1038
    %1243 = vmatpush.bf16.msra.mxu0 %v1034
    %1244 = vmatmul.bf16.gmra.mxu0 %v415
    %v1245 = vpop.f32.mrf.mxu0
    %v1246 = vadd.f32 %v1232, %v1245
    %v1247 = vpop.f32.mrf.mxu0
    %v1248 = vadd.f32 %v1234, %v1247
    %1249 = vdwg.mxu0
    %1250 = vmatpush.bf16.msra.mxu0 %v967
    %1251 = vmatpush.bf16.msra.mxu0 %v963
    %1252 = vmatpush.bf16.msra.mxu0 %v959
    %1253 = vmatpush.bf16.msra.mxu0 %v955
    %1254 = vmatpush.bf16.msra.mxu0 %v951
    %1255 = vmatpush.bf16.msra.mxu0 %v947
    %1256 = vmatpush.bf16.msra.mxu0 %v943
    %1257 = vmatpush.bf16.msra.mxu0 %v939
    %1258 = vmatmul.bf16.gmra.mxu0 %v412
    %v1259 = vpop.f32.mrf.mxu0
    %v1260 = vadd.f32 %v547, %v1259
    %v1261 = vpop.f32.mrf.mxu0
    %v1262 = vadd.f32 %v547, %v1261
    %1263 = vdwg.mxu0
    %1264 = vmatpush.bf16.msra.mxu0 %v999
    %1265 = vmatpush.bf16.msra.mxu0 %v995
    %1266 = vmatpush.bf16.msra.mxu0 %v991
    %1267 = vmatpush.bf16.msra.mxu0 %v987
    %1268 = vmatpush.bf16.msra.mxu0 %v983
    %1269 = vmatpush.bf16.msra.mxu0 %v979
    %1270 = vmatpush.bf16.msra.mxu0 %v975
    %1271 = vmatpush.bf16.msra.mxu0 %v971
    %1272 = vmatmul.bf16.gmra.mxu0 %v413
    %v1273 = vpop.f32.mrf.mxu0
    %v1274 = vadd.f32 %v1260, %v1273
    %v1275 = vpop.f32.mrf.mxu0
    %v1276 = vadd.f32 %v1262, %v1275
    %1277 = vdwg.mxu0
    %1278 = vmatpush.bf16.msra.mxu0 %v1031
    %1279 = vmatpush.bf16.msra.mxu0 %v1027
    %1280 = vmatpush.bf16.msra.mxu0 %v1023
    %1281 = vmatpush.bf16.msra.mxu0 %v1019
    %1282 = vmatpush.bf16.msra.mxu0 %v1015
    %1283 = vmatpush.bf16.msra.mxu0 %v1011
    %1284 = vmatpush.bf16.msra.mxu0 %v1007
    %1285 = vmatpush.bf16.msra.mxu0 %v1003
    %1286 = vmatmul.bf16.gmra.mxu0 %v414
    %v1287 = vpop.f32.mrf.mxu0
    %v1288 = vadd.f32 %v1274, %v1287
    %v1289 = vpop.f32.mrf.mxu0
    %v1290 = vadd.f32 %v1276, %v1289
    %1291 = vdwg.mxu0
    %1292 = vmatpush.bf16.msra.mxu0 %v1063
    %1293 = vmatpush.bf16.msra.mxu0 %v1059
    %1294 = vmatpush.bf16.msra.mxu0 %v1055
    %1295 = vmatpush.bf16.msra.mxu0 %v1051
    %1296 = vmatpush.bf16.msra.mxu0 %v1047
    %1297 = vmatpush.bf16.msra.mxu0 %v1043
    %1298 = vmatpush.bf16.msra.mxu0 %v1039
    %1299 = vmatpush.bf16.msra.mxu0 %v1035
    %1300 = vmatmul.bf16.gmra.mxu0 %v415
    %v1301 = vpop.f32.mrf.mxu0
    %v1302 = vadd.f32 %v1288, %v1301
    %v1303 = vpop.f32.mrf.mxu0
    %v1304 = vadd.f32 %v1290, %v1303
    %1305 = vdwg.mxu0
    %1306 = vmatpush.bf16.msra.mxu0 %v968
    %1307 = vmatpush.bf16.msra.mxu0 %v964
    %1308 = vmatpush.bf16.msra.mxu0 %v960
    %1309 = vmatpush.bf16.msra.mxu0 %v956
    %1310 = vmatpush.bf16.msra.mxu0 %v952
    %1311 = vmatpush.bf16.msra.mxu0 %v948
    %1312 = vmatpush.bf16.msra.mxu0 %v944
    %1313 = vmatpush.bf16.msra.mxu0 %v940
    %1314 = vmatmul.bf16.gmra.mxu0 %v412
    %v1315 = vpop.f32.mrf.mxu0
    %v1316 = vadd.f32 %v548, %v1315
    %v1317 = vpop.f32.mrf.mxu0
    %v1318 = vadd.f32 %v548, %v1317
    %1319 = vdwg.mxu0
    %1320 = vmatpush.bf16.msra.mxu0 %v1000
    %1321 = vmatpush.bf16.msra.mxu0 %v996
    %1322 = vmatpush.bf16.msra.mxu0 %v992
    %1323 = vmatpush.bf16.msra.mxu0 %v988
    %1324 = vmatpush.bf16.msra.mxu0 %v984
    %1325 = vmatpush.bf16.msra.mxu0 %v980
    %1326 = vmatpush.bf16.msra.mxu0 %v976
    %1327 = vmatpush.bf16.msra.mxu0 %v972
    %1328 = vmatmul.bf16.gmra.mxu0 %v413
    %v1329 = vpop.f32.mrf.mxu0
    %v1330 = vadd.f32 %v1316, %v1329
    %v1331 = vpop.f32.mrf.mxu0
    %v1332 = vadd.f32 %v1318, %v1331
    %1333 = vdwg.mxu0
    %1334 = vmatpush.bf16.msra.mxu0 %v1032
    %1335 = vmatpush.bf16.msra.mxu0 %v1028
    %1336 = vmatpush.bf16.msra.mxu0 %v1024
    %1337 = vmatpush.bf16.msra.mxu0 %v1020
    %1338 = vmatpush.bf16.msra.mxu0 %v1016
    %1339 = vmatpush.bf16.msra.mxu0 %v1012
    %1340 = vmatpush.bf16.msra.mxu0 %v1008
    %1341 = vmatpush.bf16.msra.mxu0 %v1004
    %1342 = vmatmul.bf16.gmra.mxu0 %v414
    %v1343 = vpop.f32.mrf.mxu0
    %v1344 = vadd.f32 %v1330, %v1343
    %v1345 = vpop.f32.mrf.mxu0
    %v1346 = vadd.f32 %v1332, %v1345
    %1347 = vdwg.mxu0
    %1348 = vmatpush.bf16.msra.mxu0 %v1064
    %1349 = vmatpush.bf16.msra.mxu0 %v1060
    %1350 = vmatpush.bf16.msra.mxu0 %v1056
    %1351 = vmatpush.bf16.msra.mxu0 %v1052
    %1352 = vmatpush.bf16.msra.mxu0 %v1048
    %1353 = vmatpush.bf16.msra.mxu0 %v1044
    %1354 = vmatpush.bf16.msra.mxu0 %v1040
    %1355 = vmatpush.bf16.msra.mxu0 %v1036
    %1356 = vmatmul.bf16.gmra.mxu0 %v415
    %v1357 = vpop.f32.mrf.mxu0
    %v1358 = vadd.f32 %v1344, %v1357
    %v1359 = vpop.f32.mrf.mxu0
    %v1360 = vadd.f32 %v1346, %v1359
    %1361 = vdwg.mxu0
    %1362 = vmatpush.bf16.msra.mxu0 %v969
    %1363 = vmatpush.bf16.msra.mxu0 %v965
    %1364 = vmatpush.bf16.msra.mxu0 %v961
    %1365 = vmatpush.bf16.msra.mxu0 %v957
    %1366 = vmatpush.bf16.msra.mxu0 %v953
    %1367 = vmatpush.bf16.msra.mxu0 %v949
    %1368 = vmatpush.bf16.msra.mxu0 %v945
    %1369 = vmatpush.bf16.msra.mxu0 %v941
    %1370 = vmatmul.bf16.gmra.mxu0 %v412
    %v1371 = vpop.f32.mrf.mxu0
    %v1372 = vadd.f32 %v549, %v1371
    %v1373 = vpop.f32.mrf.mxu0
    %v1374 = vadd.f32 %v549, %v1373
    %1375 = vdwg.mxu0
    %1376 = vmatpush.bf16.msra.mxu0 %v1001
    %1377 = vmatpush.bf16.msra.mxu0 %v997
    %1378 = vmatpush.bf16.msra.mxu0 %v993
    %1379 = vmatpush.bf16.msra.mxu0 %v989
    %1380 = vmatpush.bf16.msra.mxu0 %v985
    %1381 = vmatpush.bf16.msra.mxu0 %v981
    %1382 = vmatpush.bf16.msra.mxu0 %v977
    %1383 = vmatpush.bf16.msra.mxu0 %v973
    %1384 = vmatmul.bf16.gmra.mxu0 %v413
    %v1385 = vpop.f32.mrf.mxu0
    %v1386 = vadd.f32 %v1372, %v1385
    %v1387 = vpop.f32.mrf.mxu0
    %v1388 = vadd.f32 %v1374, %v1387
    %1389 = vdwg.mxu0
    %1390 = vmatpush.bf16.msra.mxu0 %v1033
    %1391 = vmatpush.bf16.msra.mxu0 %v1029
    %1392 = vmatpush.bf16.msra.mxu0 %v1025
    %1393 = vmatpush.bf16.msra.mxu0 %v1021
    %1394 = vmatpush.bf16.msra.mxu0 %v1017
    %1395 = vmatpush.bf16.msra.mxu0 %v1013
    %1396 = vmatpush.bf16.msra.mxu0 %v1009
    %1397 = vmatpush.bf16.msra.mxu0 %v1005
    %1398 = vmatmul.bf16.gmra.mxu0 %v414
    %v1399 = vpop.f32.mrf.mxu0
    %v1400 = vadd.f32 %v1386, %v1399
    %v1401 = vpop.f32.mrf.mxu0
    %v1402 = vadd.f32 %v1388, %v1401
    %1403 = vdwg.mxu0
    %1404 = vmatpush.bf16.msra.mxu0 %v1065
    %1405 = vmatpush.bf16.msra.mxu0 %v1061
    %1406 = vmatpush.bf16.msra.mxu0 %v1057
    %1407 = vmatpush.bf16.msra.mxu0 %v1053
    %1408 = vmatpush.bf16.msra.mxu0 %v1049
    %1409 = vmatpush.bf16.msra.mxu0 %v1045
    %1410 = vmatpush.bf16.msra.mxu0 %v1041
    %1411 = vmatpush.bf16.msra.mxu0 %v1037
    %1412 = vmatmul.bf16.gmra.mxu0 %v415
    %v1413 = vpop.f32.mrf.mxu0
    %v1414 = vadd.f32 %v1400, %v1413
    %v1415 = vpop.f32.mrf.mxu0
    %v1416 = vadd.f32 %v1402, %v1415
    %1417 = vdwg.mxu0
    %v1418 = vmax.f32 %v1246, 0.0
    %v1419 = vmax.f32 %v1302, 0.0
    %v1420 = vmax.f32 %v1358, 0.0
    %v1421 = vmax.f32 %v1414, 0.0
    %v1422 = vmax.f32 %v1248, 0.0
    %v1423 = vmax.f32 %v1304, 0.0
    %v1424 = vmax.f32 %v1360, 0.0
    %v1425 = vmax.f32 %v1416, 0.0
    %v1426 = vpack.c.bf16 %v1422, %v1418
    %v1427 = vpack.c.bf16 %v1423, %v1419
    %v1428 = vpack.c.bf16 %v1424, %v1420
    %v1429 = vpack.c.bf16 %v1425, %v1421
    %v1430 = vld [vmem:[#allocation11] sm:$0xff]
    %v1431 = vld [vmem:[#allocation11 + $0x8] sm:$0xff]
    %v1432 = vld [vmem:[#allocation11 + $0x10] sm:$0xff]
    %v1433 = vld [vmem:[#allocation11 + $0x18] sm:$0xff]
    %v1434 = vld [vmem:[#allocation11 + $0x20] sm:$0xff]
    %v1435 = vld [vmem:[#allocation11 + $0x28] sm:$0xff]
    %v1436 = vld [vmem:[#allocation11 + $0x30] sm:$0xff]
    %v1437 = vld [vmem:[#allocation11 + $0x38] sm:$0xff]
    %v1438 = vld [vmem:[#allocation11 + $0x40] sm:$0xff]
    %v1439 = vld [vmem:[#allocation11 + $0x48] sm:$0xff]
    %v1440 = vld [vmem:[#allocation11 + $0x50] sm:$0xff]
    %v1441 = vld [vmem:[#allocation11 + $0x58] sm:$0xff]
    %v1442 = vld [vmem:[#allocation11 + $0x60] sm:$0xff]
    %v1443 = vld [vmem:[#allocation11 + $0x68] sm:$0xff]
    %v1444 = vld [vmem:[#allocation11 + $0x70] sm:$0xff]
    %v1445 = vld [vmem:[#allocation11 + $0x78] sm:$0xff]
    %v1446 = vld [vmem:[#allocation11 + $0x80] sm:$0xff]
    %v1447 = vld [vmem:[#allocation11 + $0x88] sm:$0xff]
    %v1448 = vld [vmem:[#allocation11 + $0x90] sm:$0xff]
    %v1449 = vld [vmem:[#allocation11 + $0x98] sm:$0xff]
    %v1450 = vld [vmem:[#allocation11 + $0xa0] sm:$0xff]
    %v1451 = vld [vmem:[#allocation11 + $0xa8] sm:$0xff]
    %v1452 = vld [vmem:[#allocation11 + $0xb0] sm:$0xff]
    %v1453 = vld [vmem:[#allocation11 + $0xb8] sm:$0xff]
    %v1454 = vld [vmem:[#allocation11 + $0xc0] sm:$0xff]
    %v1455 = vld [vmem:[#allocation11 + $0xc8] sm:$0xff]
    %v1456 = vld [vmem:[#allocation11 + $0xd0] sm:$0xff]
    %v1457 = vld [vmem:[#allocation11 + $0xd8] sm:$0xff]
    %v1458 = vld [vmem:[#allocation11 + $0xe0] sm:$0xff]
    %v1459 = vld [vmem:[#allocation11 + $0xe8] sm:$0xff]
    %v1460 = vld [vmem:[#allocation11 + $0xf0] sm:$0xff]
    %v1461 = vld [vmem:[#allocation11 + $0xf8] sm:$0xff]
    %v1462 = vld [vmem:[#allocation11 + $0x100] sm:$0xff]
    %v1463 = vld [vmem:[#allocation11 + $0x108] sm:$0xff]
    %v1464 = vld [vmem:[#allocation11 + $0x110] sm:$0xff]
    %v1465 = vld [vmem:[#allocation11 + $0x118] sm:$0xff]
    %v1466 = vld [vmem:[#allocation11 + $0x120] sm:$0xff]
    %v1467 = vld [vmem:[#allocation11 + $0x128] sm:$0xff]
    %v1468 = vld [vmem:[#allocation11 + $0x130] sm:$0xff]
    %v1469 = vld [vmem:[#allocation11 + $0x138] sm:$0xff]
    %v1470 = vld [vmem:[#allocation11 + $0x140] sm:$0xff]
    %v1471 = vld [vmem:[#allocation11 + $0x148] sm:$0xff]
    %v1472 = vld [vmem:[#allocation11 + $0x150] sm:$0xff]
    %v1473 = vld [vmem:[#allocation11 + $0x158] sm:$0xff]
    %v1474 = vld [vmem:[#allocation11 + $0x160] sm:$0xff]
    %v1475 = vld [vmem:[#allocation11 + $0x168] sm:$0xff]
    %v1476 = vld [vmem:[#allocation11 + $0x170] sm:$0xff]
    %v1477 = vld [vmem:[#allocation11 + $0x178] sm:$0xff]
    %v1478 = vld [vmem:[#allocation11 + $0x180] sm:$0xff]
    %v1479 = vld [vmem:[#allocation11 + $0x188] sm:$0xff]
    %v1480 = vld [vmem:[#allocation11 + $0x190] sm:$0xff]
    %v1481 = vld [vmem:[#allocation11 + $0x198] sm:$0xff]
    %v1482 = vld [vmem:[#allocation11 + $0x1a0] sm:$0xff]
    %v1483 = vld [vmem:[#allocation11 + $0x1a8] sm:$0xff]
    %v1484 = vld [vmem:[#allocation11 + $0x1b0] sm:$0xff]
    %v1485 = vld [vmem:[#allocation11 + $0x1b8] sm:$0xff]
    %v1486 = vld [vmem:[#allocation11 + $0x1c0] sm:$0xff]
    %v1487 = vld [vmem:[#allocation11 + $0x1c8] sm:$0xff]
    %v1488 = vld [vmem:[#allocation11 + $0x1d0] sm:$0xff]
    %v1489 = vld [vmem:[#allocation11 + $0x1d8] sm:$0xff]
    %v1490 = vld [vmem:[#allocation11 + $0x1e0] sm:$0xff]
    %v1491 = vld [vmem:[#allocation11 + $0x1e8] sm:$0xff]
    %v1492 = vld [vmem:[#allocation11 + $0x1f0] sm:$0xff]
    %v1493 = vld [vmem:[#allocation11 + $0x1f8] sm:$0xff]
    %v1494 = vld [vmem:[%s6] sm:$0x3]
    %v1496 = vperm.slane %v1494, 0
    %v1497 = vperm.slane %v1494, 1
    %v1564 = vunpack.c.l.b16 %v1430
    %v1565 = vunpack.c.h.b16 %v1430
    %v1566 = vunpack.c.l.b16 %v1431
    %v1567 = vunpack.c.h.b16 %v1431
    %v1568 = vunpack.c.l.b16 %v1432
    %v1569 = vunpack.c.h.b16 %v1432
    %v1570 = vunpack.c.l.b16 %v1433
    %v1571 = vunpack.c.h.b16 %v1433
    %v1572 = vunpack.c.l.b16 %v1434
    %v1573 = vunpack.c.h.b16 %v1434
    %v1574 = vunpack.c.l.b16 %v1435
    %v1575 = vunpack.c.h.b16 %v1435
    %v1576 = vunpack.c.l.b16 %v1436
    %v1577 = vunpack.c.h.b16 %v1436
    %v1578 = vunpack.c.l.b16 %v1437
    %v1579 = vunpack.c.h.b16 %v1437
    %v1580 = vunpack.c.l.b16 %v1438
    %v1581 = vunpack.c.h.b16 %v1438
    %v1582 = vunpack.c.l.b16 %v1439
    %v1583 = vunpack.c.h.b16 %v1439
    %v1584 = vunpack.c.l.b16 %v1440
    %v1585 = vunpack.c.h.b16 %v1440
    %v1586 = vunpack.c.l.b16 %v1441
    %v1587 = vunpack.c.h.b16 %v1441
    %v1588 = vunpack.c.l.b16 %v1442
    %v1589 = vunpack.c.h.b16 %v1442
    %v1590 = vunpack.c.l.b16 %v1443
    %v1591 = vunpack.c.h.b16 %v1443
    %v1592 = vunpack.c.l.b16 %v1444
    %v1593 = vunpack.c.h.b16 %v1444
    %v1594 = vunpack.c.l.b16 %v1445
    %v1595 = vunpack.c.h.b16 %v1445
    %v1596 = vunpack.c.l.b16 %v1446
    %v1597 = vunpack.c.h.b16 %v1446
    %v1598 = vunpack.c.l.b16 %v1447
    %v1599 = vunpack.c.h.b16 %v1447
    %v1600 = vunpack.c.l.b16 %v1448
    %v1601 = vunpack.c.h.b16 %v1448
    %v1602 = vunpack.c.l.b16 %v1449
    %v1603 = vunpack.c.h.b16 %v1449
    %v1604 = vunpack.c.l.b16 %v1450
    %v1605 = vunpack.c.h.b16 %v1450
    %v1606 = vunpack.c.l.b16 %v1451
    %v1607 = vunpack.c.h.b16 %v1451
    %v1608 = vunpack.c.l.b16 %v1452
    %v1609 = vunpack.c.h.b16 %v1452
    %v1610 = vunpack.c.l.b16 %v1453
    %v1611 = vunpack.c.h.b16 %v1453
    %v1612 = vunpack.c.l.b16 %v1454
    %v1613 = vunpack.c.h.b16 %v1454
    %v1614 = vunpack.c.l.b16 %v1455
    %v1615 = vunpack.c.h.b16 %v1455
    %v1616 = vunpack.c.l.b16 %v1456
    %v1617 = vunpack.c.h.b16 %v1456
    %v1618 = vunpack.c.l.b16 %v1457
    %v1619 = vunpack.c.h.b16 %v1457
    %v1620 = vunpack.c.l.b16 %v1458
    %v1621 = vunpack.c.h.b16 %v1458
    %v1622 = vunpack.c.l.b16 %v1459
    %v1623 = vunpack.c.h.b16 %v1459
    %v1624 = vunpack.c.l.b16 %v1460
    %v1625 = vunpack.c.h.b16 %v1460
    %v1626 = vunpack.c.l.b16 %v1461
    %v1627 = vunpack.c.h.b16 %v1461
    %v1628 = vunpack.c.l.b16 %v1462
    %v1629 = vunpack.c.h.b16 %v1462
    %v1630 = vunpack.c.l.b16 %v1463
    %v1631 = vunpack.c.h.b16 %v1463
    %v1632 = vunpack.c.l.b16 %v1464
    %v1633 = vunpack.c.h.b16 %v1464
    %v1634 = vunpack.c.l.b16 %v1465
    %v1635 = vunpack.c.h.b16 %v1465
    %v1636 = vunpack.c.l.b16 %v1466
    %v1637 = vunpack.c.h.b16 %v1466
    %v1638 = vunpack.c.l.b16 %v1467
    %v1639 = vunpack.c.h.b16 %v1467
    %v1640 = vunpack.c.l.b16 %v1468
    %v1641 = vunpack.c.h.b16 %v1468
    %v1642 = vunpack.c.l.b16 %v1469
    %v1643 = vunpack.c.h.b16 %v1469
    %v1644 = vunpack.c.l.b16 %v1470
    %v1645 = vunpack.c.h.b16 %v1470
    %v1646 = vunpack.c.l.b16 %v1471
    %v1647 = vunpack.c.h.b16 %v1471
    %v1648 = vunpack.c.l.b16 %v1472
    %v1649 = vunpack.c.h.b16 %v1472
    %v1650 = vunpack.c.l.b16 %v1473
    %v1651 = vunpack.c.h.b16 %v1473
    %v1652 = vunpack.c.l.b16 %v1474
    %v1653 = vunpack.c.h.b16 %v1474
    %v1654 = vunpack.c.l.b16 %v1475
    %v1655 = vunpack.c.h.b16 %v1475
    %v1656 = vunpack.c.l.b16 %v1476
    %v1657 = vunpack.c.h.b16 %v1476
    %v1658 = vunpack.c.l.b16 %v1477
    %v1659 = vunpack.c.h.b16 %v1477
    %v1660 = vunpack.c.l.b16 %v1478
    %v1661 = vunpack.c.h.b16 %v1478
    %v1662 = vunpack.c.l.b16 %v1479
    %v1663 = vunpack.c.h.b16 %v1479
    %v1664 = vunpack.c.l.b16 %v1480
    %v1665 = vunpack.c.h.b16 %v1480
    %v1666 = vunpack.c.l.b16 %v1481
    %v1667 = vunpack.c.h.b16 %v1481
    %v1668 = vunpack.c.l.b16 %v1482
    %v1669 = vunpack.c.h.b16 %v1482
    %v1670 = vunpack.c.l.b16 %v1483
    %v1671 = vunpack.c.h.b16 %v1483
    %v1672 = vunpack.c.l.b16 %v1484
    %v1673 = vunpack.c.h.b16 %v1484
    %v1674 = vunpack.c.l.b16 %v1485
    %v1675 = vunpack.c.h.b16 %v1485
    %v1676 = vunpack.c.l.b16 %v1486
    %v1677 = vunpack.c.h.b16 %v1486
    %v1678 = vunpack.c.l.b16 %v1487
    %v1679 = vunpack.c.h.b16 %v1487
    %v1680 = vunpack.c.l.b16 %v1488
    %v1681 = vunpack.c.h.b16 %v1488
    %v1682 = vunpack.c.l.b16 %v1489
    %v1683 = vunpack.c.h.b16 %v1489
    %v1684 = vunpack.c.l.b16 %v1490
    %v1685 = vunpack.c.h.b16 %v1490
    %v1686 = vunpack.c.l.b16 %v1491
    %v1687 = vunpack.c.h.b16 %v1491
    %v1688 = vunpack.c.l.b16 %v1492
    %v1689 = vunpack.c.h.b16 %v1492
    %v1690 = vunpack.c.l.b16 %v1493
    %v1691 = vunpack.c.h.b16 %v1493
    %v1692 = vpack.c.b16 %v1566, %v1564
    %v1693 = vpack.c.b16 %v1567, %v1565
    %v1694 = vpack.c.b16 %v1570, %v1568
    %v1695 = vpack.c.b16 %v1571, %v1569
    %v1696 = vpack.c.b16 %v1574, %v1572
    %v1697 = vpack.c.b16 %v1575, %v1573
    %v1698 = vpack.c.b16 %v1578, %v1576
    %v1699 = vpack.c.b16 %v1579, %v1577
    %v1700 = vpack.c.b16 %v1582, %v1580
    %v1701 = vpack.c.b16 %v1583, %v1581
    %v1702 = vpack.c.b16 %v1586, %v1584
    %v1703 = vpack.c.b16 %v1587, %v1585
    %v1704 = vpack.c.b16 %v1590, %v1588
    %v1705 = vpack.c.b16 %v1591, %v1589
    %v1706 = vpack.c.b16 %v1594, %v1592
    %v1707 = vpack.c.b16 %v1595, %v1593
    %v1708 = vpack.c.b16 %v1598, %v1596
    %v1709 = vpack.c.b16 %v1599, %v1597
    %v1710 = vpack.c.b16 %v1602, %v1600
    %v1711 = vpack.c.b16 %v1603, %v1601
    %v1712 = vpack.c.b16 %v1606, %v1604
    %v1713 = vpack.c.b16 %v1607, %v1605
    %v1714 = vpack.c.b16 %v1610, %v1608
    %v1715 = vpack.c.b16 %v1611, %v1609
    %v1716 = vpack.c.b16 %v1614, %v1612
    %v1717 = vpack.c.b16 %v1615, %v1613
    %v1718 = vpack.c.b16 %v1618, %v1616
    %v1719 = vpack.c.b16 %v1619, %v1617
    %v1720 = vpack.c.b16 %v1622, %v1620
    %v1721 = vpack.c.b16 %v1623, %v1621
    %v1722 = vpack.c.b16 %v1626, %v1624
    %v1723 = vpack.c.b16 %v1627, %v1625
    %v1724 = vpack.c.b16 %v1630, %v1628
    %v1725 = vpack.c.b16 %v1631, %v1629
    %v1726 = vpack.c.b16 %v1634, %v1632
    %v1727 = vpack.c.b16 %v1635, %v1633
    %v1728 = vpack.c.b16 %v1638, %v1636
    %v1729 = vpack.c.b16 %v1639, %v1637
    %v1730 = vpack.c.b16 %v1642, %v1640
    %v1731 = vpack.c.b16 %v1643, %v1641
    %v1732 = vpack.c.b16 %v1646, %v1644
    %v1733 = vpack.c.b16 %v1647, %v1645
    %v1734 = vpack.c.b16 %v1650, %v1648
    %v1735 = vpack.c.b16 %v1651, %v1649
    %v1736 = vpack.c.b16 %v1654, %v1652
    %v1737 = vpack.c.b16 %v1655, %v1653
    %v1738 = vpack.c.b16 %v1658, %v1656
    %v1739 = vpack.c.b16 %v1659, %v1657
    %v1740 = vpack.c.b16 %v1662, %v1660
    %v1741 = vpack.c.b16 %v1663, %v1661
    %v1742 = vpack.c.b16 %v1666, %v1664
    %v1743 = vpack.c.b16 %v1667, %v1665
    %v1744 = vpack.c.b16 %v1670, %v1668
    %v1745 = vpack.c.b16 %v1671, %v1669
    %v1746 = vpack.c.b16 %v1674, %v1672
    %v1747 = vpack.c.b16 %v1675, %v1673
    %v1748 = vpack.c.b16 %v1678, %v1676
    %v1749 = vpack.c.b16 %v1679, %v1677
    %v1750 = vpack.c.b16 %v1682, %v1680
    %v1751 = vpack.c.b16 %v1683, %v1681
    %v1752 = vpack.c.b16 %v1686, %v1684
    %v1753 = vpack.c.b16 %v1687, %v1685
    %v1754 = vpack.c.b16 %v1690, %v1688
    %v1755 = vpack.c.b16 %v1691, %v1689
    %1820 = vmatpush.bf16.msra.mxu0 %v1706
    %1821 = vmatpush.bf16.msra.mxu0 %v1704
    %1822 = vmatpush.bf16.msra.mxu0 %v1702
    %1823 = vmatpush.bf16.msra.mxu0 %v1700
    %1824 = vmatpush.bf16.msra.mxu0 %v1698
    %1825 = vmatpush.bf16.msra.mxu0 %v1696
    %1826 = vmatpush.bf16.msra.mxu0 %v1694
    %1827 = vmatpush.bf16.msra.mxu0 %v1692
    %1828 = vmatmul.bf16.gmra.mxu0 %v1426
    %v1829 = vpop.f32.mrf.mxu0
    %v1830 = vadd.f32 %v1496, %v1829
    %v1831 = vpop.f32.mrf.mxu0
    %v1832 = vadd.f32 %v1496, %v1831
    %1833 = vdwg.mxu0
    %1834 = vmatpush.bf16.msra.mxu0 %v1722
    %1835 = vmatpush.bf16.msra.mxu0 %v1720
    %1836 = vmatpush.bf16.msra.mxu0 %v1718
    %1837 = vmatpush.bf16.msra.mxu0 %v1716
    %1838 = vmatpush.bf16.msra.mxu0 %v1714
    %1839 = vmatpush.bf16.msra.mxu0 %v1712
    %1840 = vmatpush.bf16.msra.mxu0 %v1710
    %1841 = vmatpush.bf16.msra.mxu0 %v1708
    %1842 = vmatmul.bf16.gmra.mxu0 %v1427
    %v1843 = vpop.f32.mrf.mxu0
    %v1844 = vadd.f32 %v1830, %v1843
    %v1845 = vpop.f32.mrf.mxu0
    %v1846 = vadd.f32 %v1832, %v1845
    %1847 = vdwg.mxu0
    %1848 = vmatpush.bf16.msra.mxu0 %v1738
    %1849 = vmatpush.bf16.msra.mxu0 %v1736
    %1850 = vmatpush.bf16.msra.mxu0 %v1734
    %1851 = vmatpush.bf16.msra.mxu0 %v1732
    %1852 = vmatpush.bf16.msra.mxu0 %v1730
    %1853 = vmatpush.bf16.msra.mxu0 %v1728
    %1854 = vmatpush.bf16.msra.mxu0 %v1726
    %1855 = vmatpush.bf16.msra.mxu0 %v1724
    %1856 = vmatmul.bf16.gmra.mxu0 %v1428
    %v1857 = vpop.f32.mrf.mxu0
    %v1858 = vadd.f32 %v1844, %v1857
    %v1859 = vpop.f32.mrf.mxu0
    %v1860 = vadd.f32 %v1846, %v1859
    %1861 = vdwg.mxu0
    %1862 = vmatpush.bf16.msra.mxu0 %v1754
    %1863 = vmatpush.bf16.msra.mxu0 %v1752
    %1864 = vmatpush.bf16.msra.mxu0 %v1750
    %1865 = vmatpush.bf16.msra.mxu0 %v1748
    %1866 = vmatpush.bf16.msra.mxu0 %v1746
    %1867 = vmatpush.bf16.msra.mxu0 %v1744
    %1868 = vmatpush.bf16.msra.mxu0 %v1742
    %1869 = vmatpush.bf16.msra.mxu0 %v1740
    %1870 = vmatmul.bf16.gmra.mxu0 %v1429
    %v1871 = vpop.f32.mrf.mxu0
    %v1872 = vadd.f32 %v1858, %v1871
    %v1873 = vpop.f32.mrf.mxu0
    %v1874 = vadd.f32 %v1860, %v1873
    %1875 = vdwg.mxu0
    %1876 = vmatpush.bf16.msra.mxu0 %v1707
    %1877 = vmatpush.bf16.msra.mxu0 %v1705
    %1878 = vmatpush.bf16.msra.mxu0 %v1703
    %1879 = vmatpush.bf16.msra.mxu0 %v1701
    %1880 = vmatpush.bf16.msra.mxu0 %v1699
    %1881 = vmatpush.bf16.msra.mxu0 %v1697
    %1882 = vmatpush.bf16.msra.mxu0 %v1695
    %1883 = vmatpush.bf16.msra.mxu0 %v1693
    %1884 = vmatmul.bf16.gmra.mxu0 %v1426
    %v1885 = vpop.f32.mrf.mxu0
    %v1886 = vadd.f32 %v1497, %v1885
    %v1887 = vpop.f32.mrf.mxu0
    %v1888 = vadd.f32 %v1497, %v1887
    %1889 = vdwg.mxu0
    %1890 = vmatpush.bf16.msra.mxu0 %v1723
    %1891 = vmatpush.bf16.msra.mxu0 %v1721
    %1892 = vmatpush.bf16.msra.mxu0 %v1719
    %1893 = vmatpush.bf16.msra.mxu0 %v1717
    %1894 = vmatpush.bf16.msra.mxu0 %v1715
    %1895 = vmatpush.bf16.msra.mxu0 %v1713
    %1896 = vmatpush.bf16.msra.mxu0 %v1711
    %1897 = vmatpush.bf16.msra.mxu0 %v1709
    %1898 = vmatmul.bf16.gmra.mxu0 %v1427
    %v1899 = vpop.f32.mrf.mxu0
    %v1900 = vadd.f32 %v1886, %v1899
    %v1901 = vpop.f32.mrf.mxu0
    %v1902 = vadd.f32 %v1888, %v1901
    %1903 = vdwg.mxu0
    %1904 = vmatpush.bf16.msra.mxu0 %v1739
    %1905 = vmatpush.bf16.msra.mxu0 %v1737
    %1906 = vmatpush.bf16.msra.mxu0 %v1735
    %1907 = vmatpush.bf16.msra.mxu0 %v1733
    %1908 = vmatpush.bf16.msra.mxu0 %v1731
    %1909 = vmatpush.bf16.msra.mxu0 %v1729
    %1910 = vmatpush.bf16.msra.mxu0 %v1727
    %1911 = vmatpush.bf16.msra.mxu0 %v1725
    %1912 = vmatmul.bf16.gmra.mxu0 %v1428
    %v1913 = vpop.f32.mrf.mxu0
    %v1914 = vadd.f32 %v1900, %v1913
    %v1915 = vpop.f32.mrf.mxu0
    %v1916 = vadd.f32 %v1902, %v1915
    %1917 = vdwg.mxu0
    %1918 = vmatpush.bf16.msra.mxu0 %v1755
    %1919 = vmatpush.bf16.msra.mxu0 %v1753
    %1920 = vmatpush.bf16.msra.mxu0 %v1751
    %1921 = vmatpush.bf16.msra.mxu0 %v1749
    %1922 = vmatpush.bf16.msra.mxu0 %v1747
    %1923 = vmatpush.bf16.msra.mxu0 %v1745
    %1924 = vmatpush.bf16.msra.mxu0 %v1743
    %1925 = vmatpush.bf16.msra.mxu0 %v1741
    %1926 = vmatmul.bf16.gmra.mxu0 %v1429
    %v1927 = vpop.f32.mrf.mxu0
    %v1928 = vadd.f32 %v1914, %v1927
    %v1929 = vpop.f32.mrf.mxu0
    %v1930 = vadd.f32 %v1916, %v1929
    %1931 = vdwg.mxu0
    %v1932 = vmax.f32 %v1872, 0.0
    %v1933 = vmax.f32 %v1928, 0.0
    %v1934 = vmax.f32 %v1874, 0.0
    %v1935 = vmax.f32 %v1930, 0.0
    %v1936 = vpack.c.bf16 %v1934, %v1932
    %v1937 = vpack.c.bf16 %v1935, %v1933
    %v1938 = vld [vmem:[#allocation13] sm:$0xf]
    %v1939 = vld [vmem:[#allocation13 + $0x4] sm:$0xf]
    %v1940 = vld [vmem:[#allocation13 + $0x8] sm:$0xf]
    %v1941 = vld [vmem:[#allocation13 + $0xc] sm:$0xf]
    %v1942 = vld [vmem:[#allocation13 + $0x10] sm:$0xf]
    %v1943 = vld [vmem:[#allocation13 + $0x14] sm:$0xf]
    %v1944 = vld [vmem:[#allocation13 + $0x18] sm:$0xf]
    %v1945 = vld [vmem:[#allocation13 + $0x1c] sm:$0xf]
    %v1946 = vld [vmem:[#allocation13 + $0x20] sm:$0xf]
    %v1947 = vld [vmem:[#allocation13 + $0x24] sm:$0xf]
    %v1948 = vld [vmem:[#allocation13 + $0x28] sm:$0xf]
    %v1949 = vld [vmem:[#allocation13 + $0x2c] sm:$0xf]
    %v1950 = vld [vmem:[#allocation13 + $0x30] sm:$0xf]
    %v1951 = vld [vmem:[#allocation13 + $0x34] sm:$0xf]
    %v1952 = vld [vmem:[#allocation13 + $0x38] sm:$0xf]
    %v1953 = vld [vmem:[#allocation13 + $0x3c] sm:$0xf]
    %v1954 = vld [vmem:[#allocation13 + $0x40] sm:$0xf]
    %v1955 = vld [vmem:[#allocation13 + $0x44] sm:$0xf]
    %v1956 = vld [vmem:[#allocation13 + $0x48] sm:$0xf]
    %v1957 = vld [vmem:[#allocation13 + $0x4c] sm:$0xf]
    %v1958 = vld [vmem:[#allocation13 + $0x50] sm:$0xf]
    %v1959 = vld [vmem:[#allocation13 + $0x54] sm:$0xf]
    %v1960 = vld [vmem:[#allocation13 + $0x58] sm:$0xf]
    %v1961 = vld [vmem:[#allocation13 + $0x5c] sm:$0xf]
    %v1962 = vld [vmem:[#allocation13 + $0x60] sm:$0xf]
    %v1963 = vld [vmem:[#allocation13 + $0x64] sm:$0xf]
    %v1964 = vld [vmem:[#allocation13 + $0x68] sm:$0xf]
    %v1965 = vld [vmem:[#allocation13 + $0x6c] sm:$0xf]
    %v1966 = vld [vmem:[#allocation13 + $0x70] sm:$0xf]
    %v1967 = vld [vmem:[#allocation13 + $0x74] sm:$0xf]
    %v1968 = vld [vmem:[#allocation13 + $0x78] sm:$0xf]
    %v1969 = vld [vmem:[#allocation13 + $0x7c] sm:$0xf]
    %v1970 = vld [vmem:[%s8] sm:$0x1]
    %v1972 = vperm.slane %v1970, 0
    %v2006 = vunpack.c.l.b16 %v1938
    %v2007 = vunpack.c.l.b16 %v1939
    %v2008 = vunpack.c.l.b16 %v1940
    %v2009 = vunpack.c.l.b16 %v1941
    %v2010 = vunpack.c.l.b16 %v1942
    %v2011 = vunpack.c.l.b16 %v1943
    %v2012 = vunpack.c.l.b16 %v1944
    %v2013 = vunpack.c.l.b16 %v1945
    %v2014 = vunpack.c.l.b16 %v1946
    %v2015 = vunpack.c.l.b16 %v1947
    %v2016 = vunpack.c.l.b16 %v1948
    %v2017 = vunpack.c.l.b16 %v1949
    %v2018 = vunpack.c.l.b16 %v1950
    %v2019 = vunpack.c.l.b16 %v1951
    %v2020 = vunpack.c.l.b16 %v1952
    %v2021 = vunpack.c.l.b16 %v1953
    %v2022 = vunpack.c.l.b16 %v1954
    %v2023 = vunpack.c.l.b16 %v1955
    %v2024 = vunpack.c.l.b16 %v1956
    %v2025 = vunpack.c.l.b16 %v1957
    %v2026 = vunpack.c.l.b16 %v1958
    %v2027 = vunpack.c.l.b16 %v1959
    %v2028 = vunpack.c.l.b16 %v1960
    %v2029 = vunpack.c.l.b16 %v1961
    %v2030 = vunpack.c.l.b16 %v1962
    %v2031 = vunpack.c.l.b16 %v1963
    %v2032 = vunpack.c.l.b16 %v1964
    %v2033 = vunpack.c.l.b16 %v1965
    %v2034 = vunpack.c.l.b16 %v1966
    %v2035 = vunpack.c.l.b16 %v1967
    %v2036 = vunpack.c.l.b16 %v1968
    %v2037 = vunpack.c.l.b16 %v1969
    %v2038 = vpack.c.b16 %v2007, %v2006
    %v2039 = vpack.c.b16 %v2009, %v2008
    %v2040 = vpack.c.b16 %v2011, %v2010
    %v2041 = vpack.c.b16 %v2013, %v2012
    %v2042 = vpack.c.b16 %v2015, %v2014
    %v2043 = vpack.c.b16 %v2017, %v2016
    %v2044 = vpack.c.b16 %v2019, %v2018
    %v2045 = vpack.c.b16 %v2021, %v2020
    %v2046 = vpack.c.b16 %v2023, %v2022
    %v2047 = vpack.c.b16 %v2025, %v2024
    %v2048 = vpack.c.b16 %v2027, %v2026
    %v2049 = vpack.c.b16 %v2029, %v2028
    %v2050 = vpack.c.b16 %v2031, %v2030
    %v2051 = vpack.c.b16 %v2033, %v2032
    %v2052 = vpack.c.b16 %v2035, %v2034
    %v2053 = vpack.c.b16 %v2037, %v2036
    %2070 = vmatpush.bf16.msra.mxu0 %v2045
    %2071 = vmatpush.bf16.msra.mxu0 %v2044
    %2072 = vmatpush.bf16.msra.mxu0 %v2043
    %2073 = vmatpush.bf16.msra.mxu0 %v2042
    %2074 = vmatpush.bf16.msra.mxu0 %v2041
    %2075 = vmatpush.bf16.msra.mxu0 %v2040
    %2076 = vmatpush.bf16.msra.mxu0 %v2039
    %2077 = vmatpush.bf16.msra.mxu0 %v2038
    %2078 = vmatmul.bf16.gmra.mxu0 %v1936
    %v2079 = vpop.f32.mrf.mxu0
    %v2080 = vadd.f32 %v1972, %v2079
    %v2081 = vpop.f32.mrf.mxu0
    %v2082 = vadd.f32 %v1972, %v2081
    %2083 = vdwg.mxu0
    %2084 = vmatpush.bf16.msra.mxu0 %v2053
    %2085 = vmatpush.bf16.msra.mxu0 %v2052
    %2086 = vmatpush.bf16.msra.mxu0 %v2051
    %2087 = vmatpush.bf16.msra.mxu0 %v2050
    %2088 = vmatpush.bf16.msra.mxu0 %v2049
    %2089 = vmatpush.bf16.msra.mxu0 %v2048
    %2090 = vmatpush.bf16.msra.mxu0 %v2047
    %2091 = vmatpush.bf16.msra.mxu0 %v2046
    %2092 = vmatmul.bf16.gmra.mxu0 %v1937
    %v2093 = vpop.f32.mrf.mxu0
    %v2094 = vadd.f32 %v2080, %v2093
    %v2095 = vpop.f32.mrf.mxu0
    %v2096 = vadd.f32 %v2082, %v2095
    %2097 = vdwg.mxu0
    %2098 = vst [vmem:[#allocation14] sm:$0xff] %v2094
    %2099 = vst [vmem:[#allocation14 + $0x8] sm:$0xff] %v2096
    // Predicated region
    $region66: #{tpu_custom_call.1} parent=1 // pred_check
      _
    $region67: #{tpu_custom_call.1} parent=1 // pred_check_branch
      %2101 = sbr.rel (0) target = $region69
    $region68: #{tpu_custom_call.1} parent=1 // pred_region
      %2103 = vsyncadd [#allocation4], 0
      %s2104 = sshll.u32 [#allocation14], 4
      %s2105 = int_to_ptr.vmem [resolvable:$true] %s2104
      %s2106 = sshll.u32 %s9, 4
      %s2107 = int_to_ptr.hbm [resolvable:$true] %s2106
      %2112 = dma.vmem_to_hbm [thread:$0]  %s2105, 256, %s2107, [#allocation4], 128, 128, 8
    $region69: #{tpu_custom_call.1} parent=1 // pred_fallthru
      _
    // Predicated region
    $region70: #{tpu_custom_call.1} parent=1 // pred_check
      _
    $region71: #{tpu_custom_call.1} parent=1 // pred_check_branch
      %2114 = sbr.rel (0) target = $region73
    $region72: #{tpu_custom_call.1} parent=1 // pred_region
      %2116 = dma.done [#allocation4], 256
    $region73: #{tpu_custom_call.1} parent=1 // pred_fallthru
      _
    %2117 = vsyncpa [#allocation3], 1
    %2118 = vsyncpa [#allocation6], 1
    %2119 = vsyncpa [#allocation9], 1
    %2120 = vsyncpa [#allocation12], 1
    %2121 = vsyncpa [#allocation4], 1

</llo_original>
